<compile_context>
chip_gen: v6e
topology: v6e:2x2x1
jax: 0.10.0
libtpu: 0.0.40
codegen_flags: <defaults>
</compile_context>

<pallas_src>
import math
import functools

import jax
import jax.numpy as jnp
from jax import lax
from jax.experimental import pallas as pl
from jax.experimental.pallas import tpu as pltpu

F32 = jnp.float32
BF16 = jnp.bfloat16
_EPS = 1e-5


def _round_up(x, m):
    return ((x + m - 1) // m) * m


@functools.lru_cache(maxsize=1)
def _hw_config():
    """Generation-aware (vmem_limit_bytes, row_tile_target)."""
    vmem_bytes = 64 * 1024 * 1024                 # conservative default (v7x per-TC)
    try:
        vmem_bytes = int(pltpu.get_tpu_info().vmem_capacity_bytes)
    except Exception:
        pass
    vmem_limit = int(vmem_bytes * 0.6)            # keep headroom on every part
    row_tile = 512 if vmem_bytes >= 96 * 1024 * 1024 else 256   # v5e/v6e: 512, v7x: 256
    return vmem_limit, row_tile


# ----------------------------------------------------------------------------
# Kernel helpers
# ----------------------------------------------------------------------------
def _layernorm(z, g, b):
    mu = jnp.mean(z, axis=-1, keepdims=True)
    var = jnp.mean((z - mu) ** 2, axis=-1, keepdims=True)
    return (z - mu) * lax.rsqrt(var + _EPS) * g + b


def _mha(q2d, k2d, v2d, wo_h, bo, head_num, mask):
    """Batched-head scaled-dot-product attention + output projection.

    q2d (Lq,D) bf16 (1/temperature already folded into the Q projection),
    k2d/v2d (Lk,D) bf16, wo_h (H,hd,D) bf16, bo (1,D) f32,
    mask (Lq,Lk) bool or None.  Returns (Lq,D) f32.
    """
    Lq, D = q2d.shape
    Lk = k2d.shape[0]
    hd = D // head_num
    qh = q2d.reshape(Lq, head_num, hd)
    kh = k2d.reshape(Lk, head_num, hd)
    vh = v2d.reshape(Lk, head_num, hd)

    s = jnp.einsum('qhd,khd->hqk', qh, kh, preferred_element_type=F32)   # (H,Lq,Lk)
    if mask is not None:
        s = jnp.where(mask[None, :, :], -1e30, s)    # finite fill: no NaN on masked rows
    s = s - jnp.max(s, axis=-1, keepdims=True)
    p = jnp.exp(s)
    p = p * pl.reciprocal(jnp.sum(p, axis=-1, keepdims=True), approx=True)

    oh = jnp.einsum('hqk,khd->hqd', p.astype(BF16), vh,
                    preferred_element_type=F32)                          # (H,Lq,hd)
    att_h = jnp.einsum('hqd,hdo->hqo', oh.astype(BF16), wo_h,
                       preferred_element_type=F32)                       # (H,Lq,D)
    return jnp.sum(att_h, axis=0) + bo                                   # (Lq,D)


# ----------------------------------------------------------------------------
# Kernels
# ----------------------------------------------------------------------------
def _attn_layer_kernel(x_ref, pad_ref, src_ref,
                       wqkv_ref, bqkv_ref, wo1_ref, bo1_ref, g1_ref, be1_ref,
                       wq_ref, bq_ref, wkv_ref, bkv_ref, wo2_ref, bo2_ref,
                       g2_ref, be2_ref, out_ref, *, head_num):
    x = x_ref[0]                                     # (L, D) f32
    src = src_ref[0]                                 # (S, Dk) f32
    L, D = x.shape

    # ---- masked self-attention -> out-proj -> residual + LN --------------
    qkv = jnp.dot(x.astype(BF16), wqkv_ref[...],
                  preferred_element_type=F32) + bqkv_ref[...]            # (L, 3D)
    qkv_b = qkv.astype(BF16)

    # causal + pad mask built in-kernel (no (L,L) HBM traffic)
    row = lax.broadcasted_iota(jnp.int32, (L, L), 0)
    col = lax.broadcasted_iota(jnp.int32, (L, L), 1)
    mask = (col > row) | (pad_ref[0] > 0)                                # (L, L) bool

    att = _mha(qkv_b[:, :D], qkv_b[:, D:2 * D], qkv_b[:, 2 * D:],
               wo1_ref[...], bo1_ref[...], head_num, mask)               # (L, D) f32
    out1 = _layernorm(att + x, g1_ref[...], be1_ref[...])

    # ---- cross-attention: query = pre-norm self-attn output (as in reference),
    #      residual = out1, no mask ----------------------------------------
    q = jnp.dot(att.astype(BF16), wq_ref[...],
                preferred_element_type=F32) + bq_ref[...]                # (L, D)
    kv = jnp.dot(src.astype(BF16), wkv_ref[...],
                 preferred_element_type=F32) + bkv_ref[...]              # (S, 2D)
    kv_b = kv.astype(BF16)
    att2 = _mha(q.astype(BF16), kv_b[:, :D], kv_b[:, D:],
                wo2_ref[...], bo2_ref[...], head_num, None)
    out_ref[0] = _layernorm(att2 + out1, g2_ref[...], be2_ref[...])


def _ff_ln_kernel(x_ref, w1_ref, b1_ref, w2_ref, b2_ref, g_ref, beta_ref, o_ref):
    x = x_ref[...]                                                       # (TM, D) f32
    h = jnp.maximum(jnp.dot(x.astype(BF16), w1_ref[...],
                            preferred_element_type=F32) + b1_ref[...], 0.0)
    y = x + jnp.dot(h.astype(BF16), w2_ref[...],
                    preferred_element_type=F32) + b2_ref[...]
    o_ref[...] = _layernorm(y, g_ref[...], beta_ref[...])


def _linear_kernel(x_ref, w_ref, b_ref, o_ref):
    o_ref[...] = jnp.dot(x_ref[...].astype(BF16), w_ref[...],
                         preferred_element_type=F32) + b_ref[...]


# ----------------------------------------------------------------------------
# Wrappers
# ----------------------------------------------------------------------------
def attention_layer_block(x, pad, src, lp, head_num, vmem_limit):
    """Fused self-attn + cross-attn + both residual/LayerNorms, grid=(B,)."""
    B, L, D = x.shape
    S, Dk = src.shape[1], src.shape[2]
    hd = D // head_num
    sa, ca = lp["self_attn"], lp["cross_attn"]
    ln1, ln2 = lp["self_ln"], lp["cross_ln"]

    def w2(shape):
        return pl.BlockSpec(shape, lambda b: (0, 0))

    def w3(shape):
        return pl.BlockSpec(shape, lambda b: (0, 0, 0))

    # TODO(synk): for very small B on v7x a second parallel grid axis over Lq
    # tiles would feed both TensorCores; SATRN decode lengths (<=50) make it moot.
    return pl.pallas_call(
        functools.partial(_attn_layer_kernel, head_num=head_num),
        out_shape=jax.ShapeDtypeStruct((B, L, D), F32),
        grid=(B,),
        in_specs=[
            pl.BlockSpec((1, L, D), lambda b: (b, 0, 0)),
            pl.BlockSpec((1, 1, L), lambda b: (b, 0, 0)),
            pl.BlockSpec((1, S, Dk), lambda b: (b, 0, 0)),
            w2((D, 3 * D)), w2((1, 3 * D)),
            w3((head_num, hd, D)), w2((1, D)),
            w2((1, D)), w2((1, D)),
            w2((D, D)), w2((1, D)),
            w2((Dk, 2 * D)), w2((1, 2 * D)),
            w3((head_num, hd, D)), w2((1, D)),
            w2((1, D)), w2((1, D)),
        ],
        out_specs=pl.BlockSpec((1, L, D), lambda b: (b, 0, 0)),
        compiler_params=pltpu.CompilerParams(
            dimension_semantics=("parallel",),
            vmem_limit_bytes=vmem_limit),
    )(x, pad, src,
      sa["wqkv"], sa["bqkv"], sa["wo"], sa["bo"], ln1["g"], ln1["b"],
      ca["wq"], ca["bq"], ca["wkv"], ca["bkv"], ca["wo"], ca["bo"],
      ln2["g"], ln2["b"])


def feedforward_ln_block(x, ff, ln, vmem_limit, row_tile):
    B, L, D = x.shape
    M = B * L
    Fd = ff["w1"].shape[1]
    x2d = x.reshape(M, D)
    TM = min(row_tile, _round_up(M, 8))
    Mp = _round_up(M, TM)
    if Mp != M:
        x2d = jnp.pad(x2d, ((0, Mp - M), (0, 0)))
    out = pl.pallas_call(
        _ff_ln_kernel,
        out_shape=jax.ShapeDtypeStruct((Mp, D), F32),
        grid=(Mp // TM,),
        in_specs=[
            pl.BlockSpec((TM, D), lambda i: (i, 0)),
            pl.BlockSpec((D, Fd), lambda i: (0, 0)),
            pl.BlockSpec((1, Fd), lambda i: (0, 0)),
            pl.BlockSpec((Fd, D), lambda i: (0, 0)),
            pl.BlockSpec((1, D), lambda i: (0, 0)),
            pl.BlockSpec((1, D), lambda i: (0, 0)),
            pl.BlockSpec((1, D), lambda i: (0, 0)),
        ],
        out_specs=pl.BlockSpec((TM, D), lambda i: (i, 0)),
        compiler_params=pltpu.CompilerParams(
            dimension_semantics=("parallel",),
            vmem_limit_bytes=vmem_limit),
    )(x2d, ff["w1"], ff["b1"], ff["w2"], ff["b2"], ln["g"], ln["b"])
    return out[:M].reshape(B, L, D)


def generator_linear(x2d, w, b, vmem_limit, row_tile):
    """w/b are pre-padded so N is a multiple of 128 (lane-dense stores)."""
    M, K = x2d.shape
    Np = w.shape[1]
    TM = min(row_tile, _round_up(M, 8))
    Mp = _round_up(M, TM)
    if Mp != M:
        x2d = jnp.pad(x2d, ((0, Mp - M), (0, 0)))
    TN = min(512, Np)
    while Np % TN:
        TN -= 128
    out = pl.pallas_call(
        _linear_kernel,
        out_shape=jax.ShapeDtypeStruct((Mp, Np), F32),
        grid=(Mp // TM, Np // TN),
        in_specs=[
            pl.BlockSpec((TM, K), lambda i, j: (i, 0)),
            pl.BlockSpec((K, TN), lambda i, j: (0, j)),
            pl.BlockSpec((1, TN), lambda i, j: (0, j)),
        ],
        out_specs=pl.BlockSpec((TM, TN), lambda i, j: (i, j)),
        compiler_params=pltpu.CompilerParams(
            dimension_semantics=("parallel", "parallel"),
            vmem_limit_bytes=vmem_limit),
    )(x2d, w, b)
    return out[:M]


# ----------------------------------------------------------------------------
# Parameter init (deterministic, in-script): weights bf16, biases/LN f32.
# 1/temperature is folded into the Q projections; wo stored as (H, hd, D);
# generator N padded to a multiple of 128.
# ----------------------------------------------------------------------------
def init_params(key, num_classes, src_dim, hidden_dim, filter_dim, layer_num, head_num):
    keys = iter(jax.random.split(key, 4096))
    D = hidden_dim
    hd = D // head_num
    temp = float(D) ** 0.5          # reference: temperature = q_channels ** 0.5

    def w(shape, scale=0.05):
        return jax.random.normal(next(keys), shape, F32) * scale

    def ln():
        return dict(g=jnp.ones((1, D), F32), b=jnp.zeros((1, D), F32))

    def mha_self():
        wq, wk, wv = w((D, D)) / temp, w((D, D)), w((D, D))
        bq, bk, bv = w((1, D)) / temp, w((1, D)), w((1, D))
        return dict(
            wqkv=jnp.concatenate([wq, wk, wv], axis=1).astype(BF16),
            bqkv=jnp.concatenate([bq, bk, bv], axis=1),
            wo=w((D, D)).reshape(head_num, hd, D).astype(BF16),
            bo=w((1, D)),
        )

    def mha_cross():
        return dict(
            wq=(w((D, D)) / temp).astype(BF16), bq=w((1, D)) / temp,
            wkv=jnp.concatenate([w((src_dim, D)), w((src_dim, D))], axis=1).astype(BF16),
            bkv=jnp.concatenate([w((1, D)), w((1, D))], axis=1),
            wo=w((D, D)).reshape(head_num, hd, D).astype(BF16),
            bo=w((1, D)),
        )

    n_pad = _round_up(num_classes, 128)
    gen_w = jnp.zeros((D, n_pad), F32).at[:, :num_classes].set(w((D, num_classes)))
    gen_b = jnp.zeros((1, n_pad), F32).at[:, :num_classes].set(w((1, num_classes)))

    return dict(
        embedding=w((num_classes + 1, D), 1.0),
        layers=[dict(self_attn=mha_self(), self_ln=ln(),
                     cross_attn=mha_cross(), cross_ln=ln(),
                     ff=dict(w1=w((D, filter_dim)).astype(BF16), b1=w((1, filter_dim)),
                             w2=w((filter_dim, D)).astype(BF16), b2=w((1, D))),
                     ff_ln=ln())
                for _ in range(layer_num)],
        gen_w=gen_w.astype(BF16), gen_b=gen_b,
    )


# ----------------------------------------------------------------------------
# Positional encoding & pad mask (plain-JAX glue)
# ----------------------------------------------------------------------------
def position_encoder_1d(in_channels, length):
    pos = jnp.arange(length, dtype=F32)[:, None]
    i = jnp.arange(in_channels, dtype=F32)[None, :]
    angle_rates = 1.0 / jnp.power(10000.0, 2.0 * jnp.floor(i / 2.0) / in_channels)
    pe = pos * angle_rates
    pe = pe.at[:, 0::2].set(jnp.sin(pe[:, 0::2]))
    pe = pe.at[:, 1::2].set(jnp.cos(pe[:, 1::2]))
    return pe


def make_pad_mask(text, pad_id):
    pad = (text == pad_id)
    pad = pad.at[:, 0].set(False)
    return pad[:, None, :].astype(jnp.int32)       # (B, 1, L) -- causal part is in-kernel


# ----------------------------------------------------------------------------
# TransformerDecoder forward (training / teacher-forcing branch)
# ----------------------------------------------------------------------------
def transformer_decoder_forward(params, src, text, *, head_num, pad_id, num_classes):
    vmem_limit, row_tile = _hw_config()
    B, L = text.shape
    D = params["embedding"].shape[1]

    tgt = jnp.take(params["embedding"], text, axis=0) * math.sqrt(D)
    tgt = tgt + position_encoder_1d(D, L)[None, :, :]
    pad = make_pad_mask(text, pad_id)
    src = src.astype(F32)

    for lp in params["layers"]:
        # fused (masked self-attn -> LN) + (cross-attn -> LN) in one pallas_call
        out = attention_layer_block(tgt, pad, src, lp, head_num, vmem_limit)
        # feed-forward + residual + LN, M-tiled
        tgt = feedforward_ln_block(out, lp["ff"], lp["ff_ln"], vmem_limit, row_tile)

    logits = generator_linear(tgt.reshape(B * L, D), params["gen_w"], params["gen_b"],
                              vmem_limit, row_tile)
    return logits[:, :num_classes].reshape(B, L, num_classes)

# TODO(synk): autoregressive (is_train=False) greedy-decode branch with per-step
# feature caching is host-side control flow and is not implemented here.


# ----------------------------------------------------------------------------
# Demo
# ----------------------------------------------------------------------------
if __name__ == "__main__":
    num_classes = 10
    src_dim = 48
    hidden_dim = 32
    filter_dim = 64
    head_num = 4
    layer_num = 2
    pad_id = 0

    B, L, S = 2, 8, 16

    root = jax.random.PRNGKey(0)
    k_param, k_src, k_txt = jax.random.split(root, 3)

    params = init_params(k_param, num_classes, src_dim, hidden_dim, filter_dim,
                         layer_num, head_num)
    src = jax.random.normal(k_src, (B, S, src_dim), F32)            # encoder features
    text = jax.random.randint(k_txt, (B, L), 0, num_classes + 1)    # token ids

    out = transformer_decoder_forward(params, src, text, head_num=head_num,
                                      pad_id=pad_id, num_classes=num_classes)
    out = jax.block_until_ready(out)

    assert out.shape == (B, L, num_classes)
    assert bool(jnp.all(jnp.isfinite(out)))
    print("KERNEL_OK")
</pallas_src>

<mosaic_0001>
module attributes {stable_mosaic.version = 11 : i64} {
  func.func @_attn_layer_kernel(%arg0: i32, %arg1: memref<1x8x32xf32, #tpu.memory_space<vmem>>, %arg2: memref<1x1x8xi32, #tpu.memory_space<vmem>>, %arg3: memref<1x16x48xf32, #tpu.memory_space<vmem>>, %arg4: memref<32x96xbf16, #tpu.memory_space<vmem>>, %arg5: memref<1x96xf32, #tpu.memory_space<vmem>>, %arg6: memref<4x8x32xbf16, #tpu.memory_space<vmem>>, %arg7: memref<1x32xf32, #tpu.memory_space<vmem>>, %arg8: memref<1x32xf32, #tpu.memory_space<vmem>>, %arg9: memref<1x32xf32, #tpu.memory_space<vmem>>, %arg10: memref<32x32xbf16, #tpu.memory_space<vmem>>, %arg11: memref<1x32xf32, #tpu.memory_space<vmem>>, %arg12: memref<48x64xbf16, #tpu.memory_space<vmem>>, %arg13: memref<1x64xf32, #tpu.memory_space<vmem>>, %arg14: memref<4x8x32xbf16, #tpu.memory_space<vmem>>, %arg15: memref<1x32xf32, #tpu.memory_space<vmem>>, %arg16: memref<1x32xf32, #tpu.memory_space<vmem>>, %arg17: memref<1x32xf32, #tpu.memory_space<vmem>>, %arg18: memref<1x8x32xf32, #tpu.memory_space<vmem>>) attributes {dimension_semantics = [#tpu.dimension_semantics<parallel>], iteration_bounds = array<i64: 2>, scalar_prefetch = 0 : i64, scratch_operands = 0 : i64, tpu.core_type = #tpu.core_type<tc>, window_params = [{transform_indices = @transform_0, window_bounds = array<i64: 1, 8, 32>}, {transform_indices = @transform_1, window_bounds = array<i64: 1, 1, 8>}, {transform_indices = @transform_2, window_bounds = array<i64: 1, 16, 48>}, {pipeline_mode = #tpu.pipeline_mode<synchronous>, transform_indices = @transform_3, window_bounds = array<i64: 32, 96>}, {pipeline_mode = #tpu.pipeline_mode<synchronous>, transform_indices = @transform_4, window_bounds = array<i64: 1, 96>}, {pipeline_mode = #tpu.pipeline_mode<synchronous>, transform_indices = @transform_5, window_bounds = array<i64: 4, 8, 32>}, {pipeline_mode = #tpu.pipeline_mode<synchronous>, transform_indices = @transform_6, window_bounds = array<i64: 1, 32>}, {pipeline_mode = #tpu.pipeline_mode<synchronous>, transform_indices = @transform_7, window_bounds = array<i64: 1, 32>}, {pipeline_mode = #tpu.pipeline_mode<synchronous>, transform_indices = @transform_8, window_bounds = array<i64: 1, 32>}, {pipeline_mode = #tpu.pipeline_mode<synchronous>, transform_indices = @transform_9, window_bounds = array<i64: 32, 32>}, {pipeline_mode = #tpu.pipeline_mode<synchronous>, transform_indices = @transform_10, window_bounds = array<i64: 1, 32>}, {pipeline_mode = #tpu.pipeline_mode<synchronous>, transform_indices = @transform_11, window_bounds = array<i64: 48, 64>}, {pipeline_mode = #tpu.pipeline_mode<synchronous>, transform_indices = @transform_12, window_bounds = array<i64: 1, 64>}, {pipeline_mode = #tpu.pipeline_mode<synchronous>, transform_indices = @transform_13, window_bounds = array<i64: 4, 8, 32>}, {pipeline_mode = #tpu.pipeline_mode<synchronous>, transform_indices = @transform_14, window_bounds = array<i64: 1, 32>}, {pipeline_mode = #tpu.pipeline_mode<synchronous>, transform_indices = @transform_15, window_bounds = array<i64: 1, 32>}, {pipeline_mode = #tpu.pipeline_mode<synchronous>, transform_indices = @transform_16, window_bounds = array<i64: 1, 32>}, {transform_indices = @transform_17, window_bounds = array<i64: 1, 8, 32>}]} {
    %c0 = arith.constant 0 : index
    %c0_0 = arith.constant 0 : index
    %c0_1 = arith.constant 0 : index
    %0 = vector.load %arg1[%c0, %c0_0, %c0_1] : memref<1x8x32xf32, #tpu.memory_space<vmem>>, vector<1x8x32xf32>
    %1 = vector.shape_cast %0 : vector<1x8x32xf32> to vector<8x32xf32>
    %c0_2 = arith.constant 0 : index
    %c0_3 = arith.constant 0 : index
    %c0_4 = arith.constant 0 : index
    %2 = vector.load %arg3[%c0_2, %c0_3, %c0_4] : memref<1x16x48xf32, #tpu.memory_space<vmem>>, vector<1x16x48xf32>
    %3 = vector.shape_cast %2 : vector<1x16x48xf32> to vector<16x48xf32>
    %4 = arith.truncf %1 : vector<8x32xf32> to vector<8x32xbf16>
    %c0_5 = arith.constant 0 : index
    %c0_6 = arith.constant 0 : index
    %5 = vector.load %arg4[%c0_5, %c0_6] : memref<32x96xbf16, #tpu.memory_space<vmem>>, vector<32x96xbf16>
    %cst = arith.constant dense<0.000000e+00> : vector<8x96xf32>
    %6 = tpu.matmul %4, %5, %cst {dimension_numbers = #tpu.dot_dimension_numbers<[1], [0], [0], [1], [0, 0, 1, 1], [], []>} : vector<8x32xbf16>, vector<32x96xbf16>, vector<8x96xf32> -> vector<8x96xf32>
    %c0_7 = arith.constant 0 : index
    %c0_8 = arith.constant 0 : index
    %7 = vector.load %arg5[%c0_7, %c0_8] : memref<1x96xf32, #tpu.memory_space<vmem>>, vector<1x96xf32>
    %8 = vector.broadcast %7 : vector<1x96xf32> to vector<8x96xf32>
    %9 = arith.addf %6, %8 : vector<8x96xf32>
    %10 = arith.truncf %9 : vector<8x96xf32> to vector<8x96xbf16>
    %11 = tpu.iota {dimensions = array<i32: 0>} : vector<8x8xi32>
    %12 = tpu.iota {dimensions = array<i32: 1>} : vector<8x8xi32>
    %13 = arith.cmpi sgt, %12, %11 : vector<8x8xi32>
    %c0_9 = arith.constant 0 : index
    %c0_10 = arith.constant 0 : index
    %c0_11 = arith.constant 0 : index
    %14 = vector.load %arg2[%c0_9, %c0_10, %c0_11] : memref<1x1x8xi32, #tpu.memory_space<vmem>>, vector<1x1x8xi32>
    %15 = vector.shape_cast %14 : vector<1x1x8xi32> to vector<1x8xi32>
    %c0_i32 = arith.constant 0 : i32
    %16 = vector.broadcast %c0_i32 : i32 to vector<1x8xi32>
    %17 = arith.cmpi sgt, %15, %16 : vector<1x8xi32>
    %18 = vector.broadcast %17 : vector<1x8xi1> to vector<8x8xi1>
    %19 = arith.ori %13, %18 : vector<8x8xi1>
    %20 = vector.extract_strided_slice %10 {offsets = [0, 0], sizes = [8, 32], strides = [1, 1]} : vector<8x96xbf16> to vector<8x32xbf16>
    %21 = vector.extract_strided_slice %10 {offsets = [0, 32], sizes = [8, 32], strides = [1, 1]} : vector<8x96xbf16> to vector<8x32xbf16>
    %22 = vector.extract_strided_slice %10 {offsets = [0, 64], sizes = [8, 32], strides = [1, 1]} : vector<8x96xbf16> to vector<8x32xbf16>
    %c0_12 = arith.constant 0 : index
    %c0_13 = arith.constant 0 : index
    %c0_14 = arith.constant 0 : index
    %23 = vector.load %arg6[%c0_12, %c0_13, %c0_14] : memref<4x8x32xbf16, #tpu.memory_space<vmem>>, vector<4x8x32xbf16>
    %c0_15 = arith.constant 0 : index
    %c0_16 = arith.constant 0 : index
    %24 = vector.load %arg7[%c0_15, %c0_16] : memref<1x32xf32, #tpu.memory_space<vmem>>, vector<1x32xf32>
    %25 = vector.shape_cast %20 : vector<8x32xbf16> to vector<8x4x8xbf16>
    %26 = vector.shape_cast %21 : vector<8x32xbf16> to vector<8x4x8xbf16>
    %27 = vector.shape_cast %22 : vector<8x32xbf16> to vector<8x4x8xbf16>
    "tpu.trace_start"() <{level = 10 : i32, message = "qhd,khd->hqk"}> : () -> ()
    %cst_17 = arith.constant dense<0.000000e+00> : vector<4x8x8xf32>
    %28 = tpu.matmul %25, %26, %cst_17 {dimension_numbers = #tpu.dot_dimension_numbers<[2], [2], [0], [0], [0, 1, 0, 0, 1, 0], [1], [1]>} : vector<8x4x8xbf16>, vector<8x4x8xbf16>, vector<4x8x8xf32> -> vector<4x8x8xf32>
    "tpu.trace_stop"() : () -> ()
    %29 = vector.shape_cast %19 : vector<8x8xi1> to vector<1x8x8xi1>
    %cst_18 = arith.constant -1.000000e+30 : f32
    %30 = vector.shape_cast %29 : vector<1x8x8xi1> to vector<1x8x8xi1>
    %31 = vector.broadcast %30 : vector<1x8x8xi1> to vector<4x8x8xi1>
    %32 = vector.broadcast %cst_18 : f32 to vector<4x8x8xf32>
    %33 = arith.select %31, %32, %28 : vector<4x8x8xi1>, vector<4x8x8xf32>
    %cst_19 = arith.constant dense<0xFF800000> : vector<4x8xf32>
    %34 = vector.multi_reduction <maximumf>, %33, %cst_19 [2] : vector<4x8x8xf32> to vector<4x8xf32>
    %35 = vector.shape_cast %34 : vector<4x8xf32> to vector<4x8x1xf32>
    %36 = vector.broadcast %35 : vector<4x8x1xf32> to vector<4x8x8xf32>
    %37 = arith.subf %33, %36 : vector<4x8x8xf32>
    %38 = math.exp %37 : vector<4x8x8xf32>
    %cst_20 = arith.constant dense<0.000000e+00> : vector<4x8xf32>
    %39 = vector.multi_reduction <add>, %38, %cst_20 [2] : vector<4x8x8xf32> to vector<4x8xf32>
    %40 = vector.shape_cast %39 : vector<4x8xf32> to vector<4x8x1xf32>
    %41 = tpu.reciprocal %40 {approx = true} : vector<4x8x1xf32> -> vector<4x8x1xf32>
    %42 = vector.broadcast %41 : vector<4x8x1xf32> to vector<4x8x8xf32>
    %43 = arith.mulf %38, %42 : vector<4x8x8xf32>
    %44 = arith.truncf %43 : vector<4x8x8xf32> to vector<4x8x8xbf16>
    "tpu.trace_start"() <{level = 10 : i32, message = "hqk,khd->hqd"}> : () -> ()
    %cst_21 = arith.constant dense<0.000000e+00> : vector<4x8x8xf32>
    %45 = tpu.matmul %44, %27, %cst_21 {dimension_numbers = #tpu.dot_dimension_numbers<[2], [0], [1], [2], [0, 0, 0, 1, 1, 2], [0], [1]>} : vector<4x8x8xbf16>, vector<8x4x8xbf16>, vector<4x8x8xf32> -> vector<4x8x8xf32>
    "tpu.trace_stop"() : () -> ()
    %46 = arith.truncf %45 : vector<4x8x8xf32> to vector<4x8x8xbf16>
    "tpu.trace_start"() <{level = 10 : i32, message = "hqd,hdo->hqo"}> : () -> ()
    %cst_22 = arith.constant dense<0.000000e+00> : vector<4x8x32xf32>
    %47 = tpu.matmul %46, %23, %cst_22 {dimension_numbers = #tpu.dot_dimension_numbers<[2], [1], [1], [2], [0, 0, 0, 1, 1, 2], [0], [0]>} : vector<4x8x8xbf16>, vector<4x8x32xbf16>, vector<4x8x32xf32> -> vector<4x8x32xf32>
    "tpu.trace_stop"() : () -> ()
    %cst_23 = arith.constant dense<0.000000e+00> : vector<8x32xf32>
    %48 = vector.multi_reduction <add>, %47, %cst_23 [0] : vector<4x8x32xf32> to vector<8x32xf32>
    %49 = vector.broadcast %24 : vector<1x32xf32> to vector<8x32xf32>
    %50 = arith.addf %48, %49 : vector<8x32xf32>
    %51 = arith.addf %50, %1 : vector<8x32xf32>
    %c0_24 = arith.constant 0 : index
    %c0_25 = arith.constant 0 : index
    %52 = vector.load %arg8[%c0_24, %c0_25] : memref<1x32xf32, #tpu.memory_space<vmem>>, vector<1x32xf32>
    %c0_26 = arith.constant 0 : index
    %c0_27 = arith.constant 0 : index
    %53 = vector.load %arg9[%c0_26, %c0_27] : memref<1x32xf32, #tpu.memory_space<vmem>>, vector<1x32xf32>
    %cst_28 = arith.constant dense<0.000000e+00> : vector<8xf32>
    %54 = vector.multi_reduction <add>, %51, %cst_28 [1] : vector<8x32xf32> to vector<8xf32>
    %55 = vector.shape_cast %54 : vector<8xf32> to vector<8x1xf32>
    %cst_29 = arith.constant 3.200000e+01 : f32
    %56 = vector.broadcast %cst_29 : f32 to vector<8x1xf32>
    %57 = arith.divf %55, %56 : vector<8x1xf32>
    %58 = vector.broadcast %57 : vector<8x1xf32> to vector<8x32xf32>
    %59 = arith.subf %51, %58 : vector<8x32xf32>
    %60 = arith.mulf %59, %59 : vector<8x32xf32>
    %cst_30 = arith.constant dense<0.000000e+00> : vector<8xf32>
    %61 = vector.multi_reduction <add>, %60, %cst_30 [1] : vector<8x32xf32> to vector<8xf32>
    %62 = vector.shape_cast %61 : vector<8xf32> to vector<8x1xf32>
    %cst_31 = arith.constant 3.200000e+01 : f32
    %63 = vector.broadcast %cst_31 : f32 to vector<8x1xf32>
    %64 = arith.divf %62, %63 : vector<8x1xf32>
    %65 = vector.broadcast %57 : vector<8x1xf32> to vector<8x32xf32>
    %66 = arith.subf %51, %65 : vector<8x32xf32>
    %cst_32 = arith.constant 9.99999974E-6 : f32
    %67 = vector.broadcast %cst_32 : f32 to vector<8x1xf32>
    %68 = arith.addf %64, %67 : vector<8x1xf32>
    %69 = math.rsqrt %68 : vector<8x1xf32>
    %70 = vector.broadcast %69 : vector<8x1xf32> to vector<8x32xf32>
    %71 = arith.mulf %66, %70 : vector<8x32xf32>
    %72 = vector.broadcast %52 : vector<1x32xf32> to vector<8x32xf32>
    %73 = arith.mulf %71, %72 : vector<8x32xf32>
    %74 = vector.broadcast %53 : vector<1x32xf32> to vector<8x32xf32>
    %75 = arith.addf %73, %74 : vector<8x32xf32>
    %76 = arith.truncf %50 : vector<8x32xf32> to vector<8x32xbf16>
    %c0_33 = arith.constant 0 : index
    %c0_34 = arith.constant 0 : index
    %77 = vector.load %arg10[%c0_33, %c0_34] : memref<32x32xbf16, #tpu.memory_space<vmem>>, vector<32x32xbf16>
    %cst_35 = arith.constant dense<0.000000e+00> : vector<8x32xf32>
    %78 = tpu.matmul %76, %77, %cst_35 {dimension_numbers = #tpu.dot_dimension_numbers<[1], [0], [0], [1], [0, 0, 1, 1], [], []>} : vector<8x32xbf16>, vector<32x32xbf16>, vector<8x32xf32> -> vector<8x32xf32>
    %c0_36 = arith.constant 0 : index
    %c0_37 = arith.constant 0 : index
    %79 = vector.load %arg11[%c0_36, %c0_37] : memref<1x32xf32, #tpu.memory_space<vmem>>, vector<1x32xf32>
    %80 = vector.broadcast %79 : vector<1x32xf32> to vector<8x32xf32>
    %81 = arith.addf %78, %80 : vector<8x32xf32>
    %82 = arith.truncf %3 : vector<16x48xf32> to vector<16x48xbf16>
    %c0_38 = arith.constant 0 : index
    %c0_39 = arith.constant 0 : index
    %83 = vector.load %arg12[%c0_38, %c0_39] : memref<48x64xbf16, #tpu.memory_space<vmem>>, vector<48x64xbf16>
    %cst_40 = arith.constant dense<0.000000e+00> : vector<16x64xf32>
    %84 = tpu.matmul %82, %83, %cst_40 {dimension_numbers = #tpu.dot_dimension_numbers<[1], [0], [0], [1], [0, 0, 1, 1], [], []>} : vector<16x48xbf16>, vector<48x64xbf16>, vector<16x64xf32> -> vector<16x64xf32>
    %c0_41 = arith.constant 0 : index
    %c0_42 = arith.constant 0 : index
    %85 = vector.load %arg13[%c0_41, %c0_42] : memref<1x64xf32, #tpu.memory_space<vmem>>, vector<1x64xf32>
    %86 = vector.broadcast %85 : vector<1x64xf32> to vector<16x64xf32>
    %87 = arith.addf %84, %86 : vector<16x64xf32>
    %88 = arith.truncf %87 : vector<16x64xf32> to vector<16x64xbf16>
    %89 = arith.truncf %81 : vector<8x32xf32> to vector<8x32xbf16>
    %90 = vector.extract_strided_slice %88 {offsets = [0, 0], sizes = [16, 32], strides = [1, 1]} : vector<16x64xbf16> to vector<16x32xbf16>
    %91 = vector.extract_strided_slice %88 {offsets = [0, 32], sizes = [16, 32], strides = [1, 1]} : vector<16x64xbf16> to vector<16x32xbf16>
    %c0_43 = arith.constant 0 : index
    %c0_44 = arith.constant 0 : index
    %c0_45 = arith.constant 0 : index
    %92 = vector.load %arg14[%c0_43, %c0_44, %c0_45] : memref<4x8x32xbf16, #tpu.memory_space<vmem>>, vector<4x8x32xbf16>
    %c0_46 = arith.constant 0 : index
    %c0_47 = arith.constant 0 : index
    %93 = vector.load %arg15[%c0_46, %c0_47] : memref<1x32xf32, #tpu.memory_space<vmem>>, vector<1x32xf32>
    %94 = vector.shape_cast %89 : vector<8x32xbf16> to vector<8x4x8xbf16>
    %95 = vector.shape_cast %90 : vector<16x32xbf16> to vector<16x4x8xbf16>
    %96 = vector.shape_cast %91 : vector<16x32xbf16> to vector<16x4x8xbf16>
    "tpu.trace_start"() <{level = 10 : i32, message = "qhd,khd->hqk"}> : () -> ()
    %cst_48 = arith.constant dense<0.000000e+00> : vector<4x8x16xf32>
    %97 = tpu.matmul %94, %95, %cst_48 {dimension_numbers = #tpu.dot_dimension_numbers<[2], [2], [0], [0], [0, 1, 0, 0, 1, 0], [1], [1]>} : vector<8x4x8xbf16>, vector<16x4x8xbf16>, vector<4x8x16xf32> -> vector<4x8x16xf32>
    "tpu.trace_stop"() : () -> ()
    %cst_49 = arith.constant dense<0xFF800000> : vector<4x8xf32>
    %98 = vector.multi_reduction <maximumf>, %97, %cst_49 [2] : vector<4x8x16xf32> to vector<4x8xf32>
    %99 = vector.shape_cast %98 : vector<4x8xf32> to vector<4x8x1xf32>
    %100 = vector.broadcast %99 : vector<4x8x1xf32> to vector<4x8x16xf32>
    %101 = arith.subf %97, %100 : vector<4x8x16xf32>
    %102 = math.exp %101 : vector<4x8x16xf32>
    %cst_50 = arith.constant dense<0.000000e+00> : vector<4x8xf32>
    %103 = vector.multi_reduction <add>, %102, %cst_50 [2] : vector<4x8x16xf32> to vector<4x8xf32>
    %104 = vector.shape_cast %103 : vector<4x8xf32> to vector<4x8x1xf32>
    %105 = tpu.reciprocal %104 {approx = true} : vector<4x8x1xf32> -> vector<4x8x1xf32>
    %106 = vector.broadcast %105 : vector<4x8x1xf32> to vector<4x8x16xf32>
    %107 = arith.mulf %102, %106 : vector<4x8x16xf32>
    %108 = arith.truncf %107 : vector<4x8x16xf32> to vector<4x8x16xbf16>
    "tpu.trace_start"() <{level = 10 : i32, message = "hqk,khd->hqd"}> : () -> ()
    %cst_51 = arith.constant dense<0.000000e+00> : vector<4x8x8xf32>
    %109 = tpu.matmul %108, %96, %cst_51 {dimension_numbers = #tpu.dot_dimension_numbers<[2], [0], [1], [2], [0, 0, 0, 1, 1, 2], [0], [1]>} : vector<4x8x16xbf16>, vector<16x4x8xbf16>, vector<4x8x8xf32> -> vector<4x8x8xf32>
    "tpu.trace_stop"() : () -> ()
    %110 = arith.truncf %109 : vector<4x8x8xf32> to vector<4x8x8xbf16>
    "tpu.trace_start"() <{level = 10 : i32, message = "hqd,hdo->hqo"}> : () -> ()
    %cst_52 = arith.constant dense<0.000000e+00> : vector<4x8x32xf32>
    %111 = tpu.matmul %110, %92, %cst_52 {dimension_numbers = #tpu.dot_dimension_numbers<[2], [1], [1], [2], [0, 0, 0, 1, 1, 2], [0], [0]>} : vector<4x8x8xbf16>, vector<4x8x32xbf16>, vector<4x8x32xf32> -> vector<4x8x32xf32>
    "tpu.trace_stop"() : () -> ()
    %cst_53 = arith.constant dense<0.000000e+00> : vector<8x32xf32>
    %112 = vector.multi_reduction <add>, %111, %cst_53 [0] : vector<4x8x32xf32> to vector<8x32xf32>
    %113 = vector.broadcast %93 : vector<1x32xf32> to vector<8x32xf32>
    %114 = arith.addf %112, %113 : vector<8x32xf32>
    %115 = arith.addf %114, %75 : vector<8x32xf32>
    %c0_54 = arith.constant 0 : index
    %c0_55 = arith.constant 0 : index
    %116 = vector.load %arg16[%c0_54, %c0_55] : memref<1x32xf32, #tpu.memory_space<vmem>>, vector<1x32xf32>
    %c0_56 = arith.constant 0 : index
    %c0_57 = arith.constant 0 : index
    %117 = vector.load %arg17[%c0_56, %c0_57] : memref<1x32xf32, #tpu.memory_space<vmem>>, vector<1x32xf32>
    %cst_58 = arith.constant dense<0.000000e+00> : vector<8xf32>
    %118 = vector.multi_reduction <add>, %115, %cst_58 [1] : vector<8x32xf32> to vector<8xf32>
    %119 = vector.shape_cast %118 : vector<8xf32> to vector<8x1xf32>
    %cst_59 = arith.constant 3.200000e+01 : f32
    %120 = vector.broadcast %cst_59 : f32 to vector<8x1xf32>
    %121 = arith.divf %119, %120 : vector<8x1xf32>
    %122 = vector.broadcast %121 : vector<8x1xf32> to vector<8x32xf32>
    %123 = arith.subf %115, %122 : vector<8x32xf32>
    %124 = arith.mulf %123, %123 : vector<8x32xf32>
    %cst_60 = arith.constant dense<0.000000e+00> : vector<8xf32>
    %125 = vector.multi_reduction <add>, %124, %cst_60 [1] : vector<8x32xf32> to vector<8xf32>
    %126 = vector.shape_cast %125 : vector<8xf32> to vector<8x1xf32>
    %cst_61 = arith.constant 3.200000e+01 : f32
    %127 = vector.broadcast %cst_61 : f32 to vector<8x1xf32>
    %128 = arith.divf %126, %127 : vector<8x1xf32>
    %129 = vector.broadcast %121 : vector<8x1xf32> to vector<8x32xf32>
    %130 = arith.subf %115, %129 : vector<8x32xf32>
    %cst_62 = arith.constant 9.99999974E-6 : f32
    %131 = vector.broadcast %cst_62 : f32 to vector<8x1xf32>
    %132 = arith.addf %128, %131 : vector<8x1xf32>
    %133 = math.rsqrt %132 : vector<8x1xf32>
    %134 = vector.broadcast %133 : vector<8x1xf32> to vector<8x32xf32>
    %135 = arith.mulf %130, %134 : vector<8x32xf32>
    %136 = vector.broadcast %116 : vector<1x32xf32> to vector<8x32xf32>
    %137 = arith.mulf %135, %136 : vector<8x32xf32>
    %138 = vector.broadcast %117 : vector<1x32xf32> to vector<8x32xf32>
    %139 = arith.addf %137, %138 : vector<8x32xf32>
    %c0_63 = arith.constant 0 : index
    %c0_64 = arith.constant 0 : index
    %c0_65 = arith.constant 0 : index
    %140 = vector.load %arg18[%c0_63, %c0_64, %c0_65] : memref<1x8x32xf32, #tpu.memory_space<vmem>>, vector<1x8x32xf32>
    %141 = vector.shape_cast %140 : vector<1x8x32xf32> to vector<8x32xf32>
    %142 = vector.shape_cast %139 : vector<8x32xf32> to vector<1x8x32xf32>
    tpu.vector_store %arg18[%c0_63, %c0_64, %c0_65], %142 {strides = array<i32>} : memref<1x8x32xf32, #tpu.memory_space<vmem>>, vector<1x8x32xf32>,
    return
  }
  func.func @transform_0(%arg0: i32) -> (i32, i32, i32) {
    %c0_i32 = arith.constant 0 : i32
    %c0_i32_0 = arith.constant 0 : i32
    %c0_i32_1 = arith.constant 0 : i32
    return %arg0, %c0_i32, %c0_i32_0 : i32, i32, i32
  }
  func.func @transform_1(%arg0: i32) -> (i32, i32, i32) {
    %c0_i32 = arith.constant 0 : i32
    %c0_i32_0 = arith.constant 0 : i32
    %c0_i32_1 = arith.constant 0 : i32
    return %arg0, %c0_i32, %c0_i32_0 : i32, i32, i32
  }
  func.func @transform_2(%arg0: i32) -> (i32, i32, i32) {
    %c0_i32 = arith.constant 0 : i32
    %c0_i32_0 = arith.constant 0 : i32
    %c0_i32_1 = arith.constant 0 : i32
    return %arg0, %c0_i32, %c0_i32_0 : i32, i32, i32
  }
  func.func @transform_3(%arg0: i32) -> (i32, i32) {
    %c0_i32 = arith.constant 0 : i32
    %c0_i32_0 = arith.constant 0 : i32
    %c0_i32_1 = arith.constant 0 : i32
    return %c0_i32, %c0_i32_0 : i32, i32
  }
  func.func @transform_4(%arg0: i32) -> (i32, i32) {
    %c0_i32 = arith.constant 0 : i32
    %c0_i32_0 = arith.constant 0 : i32
    %c0_i32_1 = arith.constant 0 : i32
    return %c0_i32, %c0_i32_0 : i32, i32
  }
  func.func @transform_5(%arg0: i32) -> (i32, i32, i32) {
    %c0_i32 = arith.constant 0 : i32
    %c0_i32_0 = arith.constant 0 : i32
    %c0_i32_1 = arith.constant 0 : i32
    %c0_i32_2 = arith.constant 0 : i32
    return %c0_i32, %c0_i32_0, %c0_i32_1 : i32, i32, i32
  }
  func.func @transform_6(%arg0: i32) -> (i32, i32) {
    %c0_i32 = arith.constant 0 : i32
    %c0_i32_0 = arith.constant 0 : i32
    %c0_i32_1 = arith.constant 0 : i32
    return %c0_i32, %c0_i32_0 : i32, i32
  }
  func.func @transform_7(%arg0: i32) -> (i32, i32) {
    %c0_i32 = arith.constant 0 : i32
    %c0_i32_0 = arith.constant 0 : i32
    %c0_i32_1 = arith.constant 0 : i32
    return %c0_i32, %c0_i32_0 : i32, i32
  }
  func.func @transform_8(%arg0: i32) -> (i32, i32) {
    %c0_i32 = arith.constant 0 : i32
    %c0_i32_0 = arith.constant 0 : i32
    %c0_i32_1 = arith.constant 0 : i32
    return %c0_i32, %c0_i32_0 : i32, i32
  }
  func.func @transform_9(%arg0: i32) -> (i32, i32) {
    %c0_i32 = arith.constant 0 : i32
    %c0_i32_0 = arith.constant 0 : i32
    %c0_i32_1 = arith.constant 0 : i32
    return %c0_i32, %c0_i32_0 : i32, i32
  }
  func.func @transform_10(%arg0: i32) -> (i32, i32) {
    %c0_i32 = arith.constant 0 : i32
    %c0_i32_0 = arith.constant 0 : i32
    %c0_i32_1 = arith.constant 0 : i32
    return %c0_i32, %c0_i32_0 : i32, i32
  }
  func.func @transform_11(%arg0: i32) -> (i32, i32) {
    %c0_i32 = arith.constant 0 : i32
    %c0_i32_0 = arith.constant 0 : i32
    %c0_i32_1 = arith.constant 0 : i32
    return %c0_i32, %c0_i32_0 : i32, i32
  }
  func.func @transform_12(%arg0: i32) -> (i32, i32) {
    %c0_i32 = arith.constant 0 : i32
    %c0_i32_0 = arith.constant 0 : i32
    %c0_i32_1 = arith.constant 0 : i32
    return %c0_i32, %c0_i32_0 : i32, i32
  }
  func.func @transform_13(%arg0: i32) -> (i32, i32, i32) {
    %c0_i32 = arith.constant 0 : i32
    %c0_i32_0 = arith.constant 0 : i32
    %c0_i32_1 = arith.constant 0 : i32
    %c0_i32_2 = arith.constant 0 : i32
    return %c0_i32, %c0_i32_0, %c0_i32_1 : i32, i32, i32
  }
  func.func @transform_14(%arg0: i32) -> (i32, i32) {
    %c0_i32 = arith.constant 0 : i32
    %c0_i32_0 = arith.constant 0 : i32
    %c0_i32_1 = arith.constant 0 : i32
    return %c0_i32, %c0_i32_0 : i32, i32
  }
  func.func @transform_15(%arg0: i32) -> (i32, i32) {
    %c0_i32 = arith.constant 0 : i32
    %c0_i32_0 = arith.constant 0 : i32
    %c0_i32_1 = arith.constant 0 : i32
    return %c0_i32, %c0_i32_0 : i32, i32
  }
  func.func @transform_16(%arg0: i32) -> (i32, i32) {
    %c0_i32 = arith.constant 0 : i32
    %c0_i32_0 = arith.constant 0 : i32
    %c0_i32_1 = arith.constant 0 : i32
    return %c0_i32, %c0_i32_0 : i32, i32
  }
  func.func @transform_17(%arg0: i32) -> (i32, i32, i32) {
    %c0_i32 = arith.constant 0 : i32
    %c0_i32_0 = arith.constant 0 : i32
    %c0_i32_1 = arith.constant 0 : i32
    return %arg0, %c0_i32, %c0_i32_0 : i32, i32, i32
  }
}

</mosaic_0001>

<llo_original>
// kernel: tpu_custom_call.1
$region0: #{tpu_custom_call.1}
  #allocation0 [shape = 'u32[]', space=smem, size = 0x4, offset = 0x4, fixed_abs, tag = 'smem constant byte address 0x4 - core index']
  #allocation1 [shape = 'u32[144,128]{1,0:T(1,128)}', space=vmem, size = 0x12000, scoped, tag = 'internal scratch']
  %s0 = inlined_call_operand.hbm [shape: f32[2,8,32], index: 0, kind: input, shape index: {}]
  %s1 = inlined_call_operand.hbm [shape: s32[2,1,8], index: 1, kind: input, shape index: {}]
  %s2 = inlined_call_operand.hbm [shape: f32[2,16,48], index: 2, kind: input, shape index: {}]
  %s3 = inlined_call_operand.hbm [shape: bf16[32,96], index: 3, kind: input, shape index: {}]
  %s4 = inlined_call_operand.hbm [shape: f32[1,96], index: 4, kind: input, shape index: {}]
  %s5 = inlined_call_operand.hbm [shape: bf16[4,8,32], index: 5, kind: input, shape index: {}]
  %s6 = inlined_call_operand.hbm [shape: f32[1,32], index: 6, kind: input, shape index: {}]
  %s7 = inlined_call_operand.hbm [shape: f32[1,32], index: 7, kind: input, shape index: {}]
  %s8 = inlined_call_operand.hbm [shape: f32[1,32], index: 8, kind: input, shape index: {}]
  %s9 = inlined_call_operand.vmem [shape: bf16[32,32], index: 9, kind: input, shape index: {}]
  %s10 = inlined_call_operand.vmem [shape: f32[1,32], index: 10, kind: input, shape index: {}]
  %s11 = inlined_call_operand.hbm [shape: bf16[48,64], index: 11, kind: input, shape index: {}]
  %s12 = inlined_call_operand.vmem [shape: f32[1,64], index: 12, kind: input, shape index: {}]
  %s13 = inlined_call_operand.hbm [shape: bf16[4,8,32], index: 13, kind: input, shape index: {}]
  %s14 = inlined_call_operand.vmem [shape: f32[1,32], index: 14, kind: input, shape index: {}]
  %s15 = inlined_call_operand.vmem [shape: f32[1,32], index: 15, kind: input, shape index: {}]
  %s16 = inlined_call_operand.vmem [shape: f32[1,32], index: 16, kind: input, shape index: {}]
  %s17 = inlined_call_operand.hbm [shape: f32[2,8,32], index: 17, kind: output, shape index: {}]
  %s18 = sld [smem:[#allocation0]]
  $region145: #{tpu_custom_call.1} parent=0
    _
  %s20 = ssub.s32 1, %s18
  %s21 = scalar_select 0, %s20, %s18
  $region1: #{tpu_custom_call.1} parent=0
    #allocation2 [shape = 'u8[8192]{0}', space=vmem, size = 0x2000, scoped, tag = 'input window, operand 0']
    #allocation3 [shape = 's32[2]{0}', space=sflag, size = 0x8, scoped, tag = 'scoped memory for tpu_custom_call.1']
    #allocation4 [shape = 's32[2]{0}', space=sflag, size = 0x8, scoped, tag = 'scoped memory for tpu_custom_call.1']
    #allocation5 [shape = 'u8[1024]{0}', space=vmem, size = 0x400, scoped, tag = 'input window, operand 1']
    #allocation6 [shape = 's32[2]{0}', space=sflag, size = 0x8, scoped, tag = 'scoped memory for tpu_custom_call.1']
    #allocation7 [shape = 'u8[16384]{0}', space=vmem, size = 0x4000, scoped, tag = 'input window, operand 2']
    #allocation8 [shape = 'u8[8192]{0}', space=vmem, size = 0x2000, scoped, tag = 'input window, operand 3, single buffered']
    #allocation9 [shape = 's32[1]{0}', space=sflag, size = 0x4, scoped, tag = 'scoped memory for tpu_custom_call.1']
    #allocation10 [shape = 'u8[512]{0}', space=vmem, size = 0x400, scoped, tag = 'input window, operand 4, single buffered']
    #allocation11 [shape = 'u8[8192]{0}', space=vmem, size = 0x2000, scoped, tag = 'input window, operand 5, single buffered']
    #allocation12 [shape = 's32[1]{0}', space=sflag, size = 0x4, scoped, tag = 'scoped memory for tpu_custom_call.1']
    #allocation13 [shape = 'u8[512]{0}', space=vmem, size = 0x400, scoped, tag = 'input window, operand 6, single buffered']
    #allocation14 [shape = 'u8[512]{0}', space=vmem, size = 0x400, scoped, tag = 'input window, operand 7, single buffered']
    #allocation15 [shape = 's32[1]{0}', space=sflag, size = 0x4, scoped, tag = 'scoped memory for tpu_custom_call.1']
    #allocation16 [shape = 'u8[512]{0}', space=vmem, size = 0x400, scoped, tag = 'input window, operand 8, single buffered']
    #allocation17 [shape = 'u8[12288]{0}', space=vmem, size = 0x3000, scoped, tag = 'input window, operand 11, single buffered']
    #allocation18 [shape = 's32[1]{0}', space=sflag, size = 0x4, scoped, tag = 'scoped memory for tpu_custom_call.1']
    #allocation19 [shape = 'u8[8192]{0}', space=vmem, size = 0x2000, scoped, tag = 'input window, operand 13, single buffered']
    #allocation20 [shape = 'u8[8192]{0}', space=vmem, size = 0x2000, scoped, tag = 'output window, operand 0']
    %22 = vsyncpa [#allocation3], 0
    %s23 = scalar_lea.sflag [#allocation3], 1
    %24 = vsyncpa %s23, 0
    %25 = vsyncpa [#allocation6], 0
    %s26 = scalar_lea.sflag [#allocation6], 1
    %27 = vsyncpa %s26, 0
    %28 = vsyncpa [#allocation9], 0
    %29 = vsyncpa [#allocation12], 0
    %30 = vsyncpa [#allocation15], 0
    %31 = vsyncpa [#allocation18], 0
    %32 = vsyncpa [#allocation4], 0
    %s33 = scalar_lea.sflag [#allocation4], 1
    %34 = vsyncpa %s33, 0
    loop: start=0, step=1, limit=4
    $region2: #{tpu_custom_call.1} parent=1 // loop_pre_header
      _
    $region3: #{tpu_custom_call.1} parent=1 // loop_header
      %s36 = sphi 0, %s40
      %p37 = scmp.ge.s32.totalorder %s36, 4
      %s46 = sphi 0, %s48
      %s49 = sphi 0, %s46
      %s50 = sphi 0, %s49
      %s66 = sphi 0, %s50
      %s72 = sphi 0, %s74
      %s75 = sphi 0, %s72
      %s76 = sphi 0, %s75
      %s92 = sphi 0, %s76
      %s98 = sphi 0, %s100
      %s101 = sphi 0, %s98
      %s102 = sphi 0, %s101
      %s118 = sphi 0, %s102
      %s122 = sphi 0, %s122
      %s124 = sphi 0, %s122
      %s125 = sphi 0, %s124
      %s139 = sphi 0, %s125
      %s143 = sphi 0, %s143
      %s145 = sphi 0, %s143
      %s146 = sphi 0, %s145
      %s160 = sphi 0, %s146
      %s164 = sphi 0, %s164
      %s166 = sphi 0, %s164
      %s167 = sphi 0, %s166
      %s181 = sphi 0, %s167
      %s185 = sphi 0, %s185
      %s187 = sphi 0, %s185
      %s188 = sphi 0, %s187
      %s202 = sphi 0, %s188
      %s206 = sphi 0, %s206
      %s208 = sphi 0, %s206
      %s209 = sphi 0, %s208
      %s223 = sphi 0, %s209
      %s227 = sphi 0, %s227
      %s229 = sphi 0, %s227
      %s230 = sphi 0, %s229
      %s244 = sphi 0, %s230
      %s248 = sphi 0, %s248
      %s250 = sphi 0, %s248
      %s251 = sphi 0, %s250
      %s265 = sphi 0, %s251
      %s269 = sphi 0, %s269
      %s271 = sphi 0, %s269
      %s272 = sphi 0, %s271
      %s286 = sphi 0, %s272
      %s290 = sphi 0, %s290
      %s292 = sphi 0, %s290
      %s293 = sphi 0, %s292
      %s307 = sphi 0, %s293
      %s311 = sphi 0, %s311
      %s313 = sphi 0, %s311
      %s314 = sphi 0, %s313
      %s328 = sphi 0, %s314
      %s332 = sphi 0, %s332
      %s334 = sphi 0, %s332
      %s335 = sphi 0, %s334
      %s349 = sphi 0, %s335
      %s353 = sphi 0, %s353
      %s355 = sphi 0, %s353
      %s356 = sphi 0, %s355
      %s370 = sphi 0, %s356
      %s374 = sphi 0, %s374
      %s376 = sphi 0, %s374
      %s377 = sphi 0, %s376
      %s391 = sphi 0, %s377
      %s395 = sphi 0, %s395
      %s397 = sphi 0, %s395
      %s398 = sphi 0, %s397
      %s412 = sphi 0, %s398
      %s418 = sphi 0, %s420
      %s421 = sphi 0, %s418
      %s422 = sphi 0, %s421
      %s438 = sphi 0, %s422
    $region4: #{tpu_custom_call.1} parent=1 // loop_header_branch
      %39 = sbr.rel (%p37) target = $region8
    $region5: #{tpu_custom_call.1} parent=1 // loop_body
      %s41 = ssub.s32 %s36, 1
      %s42 = ssub.s32 %s36, 2
      %s43 = sadd.s32 %s36, 1
      %s44 = ssub.s32 %s36, %s43
      %p45 = scmp.eq.s32.totalorder %s44, 0
      %s47 = sadd.s32 %s46, 1
      %s48 = scalar_select %p45, %s46, %s47
      %p51 = pneg %p45
      %p52 = scmp.eq.s32.totalorder %s36, 1
      %p53 = por %p51, %p52
      %p54 = scmp.ne.s32.totalorder %s46, %s49
      %p55 = scmp.eq.s32.totalorder %s36, 0
      %p56 = por %p54, %p55
      %p57 = scmp.ne.s32.totalorder %s46, %s49
      %p58 = scmp.eq.s32.totalorder %s41, 1
      %p59 = por %p57, %p58
      %p60 = scmp.ne.s32.totalorder %s49, %s50
      %p61 = scmp.eq.s32.totalorder %s41, 0
      %p62 = por %p60, %p61
      %p63 = scmp.ne.s32.totalorder %s49, %s50
      %p64 = scmp.eq.s32.totalorder %s42, 1
      %p65 = por %p63, %p64
      %p67 = scmp.ne.s32.totalorder %s50, %s66
      %p68 = scmp.eq.s32.totalorder %s42, 0
      %p69 = por %p67, %p68
      %s70 = ssub.s32 %s36, %s43
      %p71 = scmp.eq.s32.totalorder %s70, 0
      %s73 = sadd.s32 %s72, 1
      %s74 = scalar_select %p71, %s72, %s73
      %p77 = pneg %p71
      %p78 = scmp.eq.s32.totalorder %s36, 1
      %p79 = por %p77, %p78
      %p80 = scmp.ne.s32.totalorder %s72, %s75
      %p81 = scmp.eq.s32.totalorder %s36, 0
      %p82 = por %p80, %p81
      %p83 = scmp.ne.s32.totalorder %s72, %s75
      %p84 = scmp.eq.s32.totalorder %s41, 1
      %p85 = por %p83, %p84
      %p86 = scmp.ne.s32.totalorder %s75, %s76
      %p87 = scmp.eq.s32.totalorder %s41, 0
      %p88 = por %p86, %p87
      %p89 = scmp.ne.s32.totalorder %s75, %s76
      %p90 = scmp.eq.s32.totalorder %s42, 1
      %p91 = por %p89, %p90
      %p93 = scmp.ne.s32.totalorder %s76, %s92
      %p94 = scmp.eq.s32.totalorder %s42, 0
      %p95 = por %p93, %p94
      %s96 = ssub.s32 %s36, %s43
      %p97 = scmp.eq.s32.totalorder %s96, 0
      %s99 = sadd.s32 %s98, 1
      %s100 = scalar_select %p97, %s98, %s99
      %p103 = pneg %p97
      %p104 = scmp.eq.s32.totalorder %s36, 1
      %p105 = por %p103, %p104
      %p106 = scmp.ne.s32.totalorder %s98, %s101
      %p107 = scmp.eq.s32.totalorder %s36, 0
      %p108 = por %p106, %p107
      %p109 = scmp.ne.s32.totalorder %s98, %s101
      %p110 = scmp.eq.s32.totalorder %s41, 1
      %p111 = por %p109, %p110
      %p112 = scmp.ne.s32.totalorder %s101, %s102
      %p113 = scmp.eq.s32.totalorder %s41, 0
      %p114 = por %p112, %p113
      %p115 = scmp.ne.s32.totalorder %s101, %s102
      %p116 = scmp.eq.s32.totalorder %s42, 1
      %p117 = por %p115, %p116
      %p119 = scmp.ne.s32.totalorder %s102, %s118
      %p120 = scmp.eq.s32.totalorder %s42, 0
      %p121 = por %p119, %p120
      %s123 = sadd.s32 %s122, 1
      %p126 = scmp.eq.s32.totalorder %s36, 1
      %p127 = scmp.ne.s32.totalorder %s122, %s124
      %p128 = scmp.eq.s32.totalorder %s36, 0
      %p129 = por %p127, %p128
      %p130 = scmp.ne.s32.totalorder %s122, %s124
      %p131 = scmp.eq.s32.totalorder %s41, 1
      %p132 = por %p130, %p131
      %p133 = scmp.ne.s32.totalorder %s124, %s125
      %p134 = scmp.eq.s32.totalorder %s41, 0
      %p135 = por %p133, %p134
      %p136 = scmp.ne.s32.totalorder %s124, %s125
      %p137 = scmp.eq.s32.totalorder %s42, 1
      %p138 = por %p136, %p137
      %p140 = scmp.ne.s32.totalorder %s125, %s139
      %p141 = scmp.eq.s32.totalorder %s42, 0
      %p142 = por %p140, %p141
      %s144 = sadd.s32 %s143, 1
      %p147 = scmp.eq.s32.totalorder %s36, 1
      %p148 = scmp.ne.s32.totalorder %s143, %s145
      %p149 = scmp.eq.s32.totalorder %s36, 0
      %p150 = por %p148, %p149
      %p151 = scmp.ne.s32.totalorder %s143, %s145
      %p152 = scmp.eq.s32.totalorder %s41, 1
      %p153 = por %p151, %p152
      %p154 = scmp.ne.s32.totalorder %s145, %s146
      %p155 = scmp.eq.s32.totalorder %s41, 0
      %p156 = por %p154, %p155
      %p157 = scmp.ne.s32.totalorder %s145, %s146
      %p158 = scmp.eq.s32.totalorder %s42, 1
      %p159 = por %p157, %p158
      %p161 = scmp.ne.s32.totalorder %s146, %s160
      %p162 = scmp.eq.s32.totalorder %s42, 0
      %p163 = por %p161, %p162
      %s165 = sadd.s32 %s164, 1
      %p168 = scmp.eq.s32.totalorder %s36, 1
      %p169 = scmp.ne.s32.totalorder %s164, %s166
      %p170 = scmp.eq.s32.totalorder %s36, 0
      %p171 = por %p169, %p170
      %p172 = scmp.ne.s32.totalorder %s164, %s166
      %p173 = scmp.eq.s32.totalorder %s41, 1
      %p174 = por %p172, %p173
      %p175 = scmp.ne.s32.totalorder %s166, %s167
      %p176 = scmp.eq.s32.totalorder %s41, 0
      %p177 = por %p175, %p176
      %p178 = scmp.ne.s32.totalorder %s166, %s167
      %p179 = scmp.eq.s32.totalorder %s42, 1
      %p180 = por %p178, %p179
      %p182 = scmp.ne.s32.totalorder %s167, %s181
      %p183 = scmp.eq.s32.totalorder %s42, 0
      %p184 = por %p182, %p183
      %s186 = sadd.s32 %s185, 1
      %p189 = scmp.eq.s32.totalorder %s36, 1
      %p190 = scmp.ne.s32.totalorder %s185, %s187
      %p191 = scmp.eq.s32.totalorder %s36, 0
      %p192 = por %p190, %p191
      %p193 = scmp.ne.s32.totalorder %s185, %s187
      %p194 = scmp.eq.s32.totalorder %s41, 1
      %p195 = por %p193, %p194
      %p196 = scmp.ne.s32.totalorder %s187, %s188
      %p197 = scmp.eq.s32.totalorder %s41, 0
      %p198 = por %p196, %p197
      %p199 = scmp.ne.s32.totalorder %s187, %s188
      %p200 = scmp.eq.s32.totalorder %s42, 1
      %p201 = por %p199, %p200
      %p203 = scmp.ne.s32.totalorder %s188, %s202
      %p204 = scmp.eq.s32.totalorder %s42, 0
      %p205 = por %p203, %p204
      %s207 = sadd.s32 %s206, 1
      %p210 = scmp.eq.s32.totalorder %s36, 1
      %p211 = scmp.ne.s32.totalorder %s206, %s208
      %p212 = scmp.eq.s32.totalorder %s36, 0
      %p213 = por %p211, %p212
      %p214 = scmp.ne.s32.totalorder %s206, %s208
      %p215 = scmp.eq.s32.totalorder %s41, 1
      %p216 = por %p214, %p215
      %p217 = scmp.ne.s32.totalorder %s208, %s209
      %p218 = scmp.eq.s32.totalorder %s41, 0
      %p219 = por %p217, %p218
      %p220 = scmp.ne.s32.totalorder %s208, %s209
      %p221 = scmp.eq.s32.totalorder %s42, 1
      %p222 = por %p220, %p221
      %p224 = scmp.ne.s32.totalorder %s209, %s223
      %p225 = scmp.eq.s32.totalorder %s42, 0
      %p226 = por %p224, %p225
      %s228 = sadd.s32 %s227, 1
      %p231 = scmp.eq.s32.totalorder %s36, 1
      %p232 = scmp.ne.s32.totalorder %s227, %s229
      %p233 = scmp.eq.s32.totalorder %s36, 0
      %p234 = por %p232, %p233
      %p235 = scmp.ne.s32.totalorder %s227, %s229
      %p236 = scmp.eq.s32.totalorder %s41, 1
      %p237 = por %p235, %p236
      %p238 = scmp.ne.s32.totalorder %s229, %s230
      %p239 = scmp.eq.s32.totalorder %s41, 0
      %p240 = por %p238, %p239
      %p241 = scmp.ne.s32.totalorder %s229, %s230
      %p242 = scmp.eq.s32.totalorder %s42, 1
      %p243 = por %p241, %p242
      %p245 = scmp.ne.s32.totalorder %s230, %s244
      %p246 = scmp.eq.s32.totalorder %s42, 0
      %p247 = por %p245, %p246
      %s249 = sadd.s32 %s248, 1
      %p252 = scmp.eq.s32.totalorder %s36, 1
      %p253 = scmp.ne.s32.totalorder %s248, %s250
      %p254 = scmp.eq.s32.totalorder %s36, 0
      %p255 = por %p253, %p254
      %p256 = scmp.ne.s32.totalorder %s248, %s250
      %p257 = scmp.eq.s32.totalorder %s41, 1
      %p258 = por %p256, %p257
      %p259 = scmp.ne.s32.totalorder %s250, %s251
      %p260 = scmp.eq.s32.totalorder %s41, 0
      %p261 = por %p259, %p260
      %p262 = scmp.ne.s32.totalorder %s250, %s251
      %p263 = scmp.eq.s32.totalorder %s42, 1
      %p264 = por %p262, %p263
      %p266 = scmp.ne.s32.totalorder %s251, %s265
      %p267 = scmp.eq.s32.totalorder %s42, 0
      %p268 = por %p266, %p267
      %s270 = sadd.s32 %s269, 1
      %p273 = scmp.eq.s32.totalorder %s36, 1
      %p274 = scmp.ne.s32.totalorder %s269, %s271
      %p275 = scmp.eq.s32.totalorder %s36, 0
      %p276 = por %p274, %p275
      %p277 = scmp.ne.s32.totalorder %s269, %s271
      %p278 = scmp.eq.s32.totalorder %s41, 1
      %p279 = por %p277, %p278
      %p280 = scmp.ne.s32.totalorder %s271, %s272
      %p281 = scmp.eq.s32.totalorder %s41, 0
      %p282 = por %p280, %p281
      %p283 = scmp.ne.s32.totalorder %s271, %s272
      %p284 = scmp.eq.s32.totalorder %s42, 1
      %p285 = por %p283, %p284
      %p287 = scmp.ne.s32.totalorder %s272, %s286
      %p288 = scmp.eq.s32.totalorder %s42, 0
      %p289 = por %p287, %p288
      %s291 = sadd.s32 %s290, 1
      %p294 = scmp.eq.s32.totalorder %s36, 1
      %p295 = scmp.ne.s32.totalorder %s290, %s292
      %p296 = scmp.eq.s32.totalorder %s36, 0
      %p297 = por %p295, %p296
      %p298 = scmp.ne.s32.totalorder %s290, %s292
      %p299 = scmp.eq.s32.totalorder %s41, 1
      %p300 = por %p298, %p299
      %p301 = scmp.ne.s32.totalorder %s292, %s293
      %p302 = scmp.eq.s32.totalorder %s41, 0
      %p303 = por %p301, %p302
      %p304 = scmp.ne.s32.totalorder %s292, %s293
      %p305 = scmp.eq.s32.totalorder %s42, 1
      %p306 = por %p304, %p305
      %p308 = scmp.ne.s32.totalorder %s293, %s307
      %p309 = scmp.eq.s32.totalorder %s42, 0
      %p310 = por %p308, %p309
      %s312 = sadd.s32 %s311, 1
      %p315 = scmp.eq.s32.totalorder %s36, 1
      %p316 = scmp.ne.s32.totalorder %s311, %s313
      %p317 = scmp.eq.s32.totalorder %s36, 0
      %p318 = por %p316, %p317
      %p319 = scmp.ne.s32.totalorder %s311, %s313
      %p320 = scmp.eq.s32.totalorder %s41, 1
      %p321 = por %p319, %p320
      %p322 = scmp.ne.s32.totalorder %s313, %s314
      %p323 = scmp.eq.s32.totalorder %s41, 0
      %p324 = por %p322, %p323
      %p325 = scmp.ne.s32.totalorder %s313, %s314
      %p326 = scmp.eq.s32.totalorder %s42, 1
      %p327 = por %p325, %p326
      %p329 = scmp.ne.s32.totalorder %s314, %s328
      %p330 = scmp.eq.s32.totalorder %s42, 0
      %p331 = por %p329, %p330
      %s333 = sadd.s32 %s332, 1
      %p336 = scmp.eq.s32.totalorder %s36, 1
      %p337 = scmp.ne.s32.totalorder %s332, %s334
      %p338 = scmp.eq.s32.totalorder %s36, 0
      %p339 = por %p337, %p338
      %p340 = scmp.ne.s32.totalorder %s332, %s334
      %p341 = scmp.eq.s32.totalorder %s41, 1
      %p342 = por %p340, %p341
      %p343 = scmp.ne.s32.totalorder %s334, %s335
      %p344 = scmp.eq.s32.totalorder %s41, 0
      %p345 = por %p343, %p344
      %p346 = scmp.ne.s32.totalorder %s334, %s335
      %p347 = scmp.eq.s32.totalorder %s42, 1
      %p348 = por %p346, %p347
      %p350 = scmp.ne.s32.totalorder %s335, %s349
      %p351 = scmp.eq.s32.totalorder %s42, 0
      %p352 = por %p350, %p351
      %s354 = sadd.s32 %s353, 1
      %p357 = scmp.eq.s32.totalorder %s36, 1
      %p358 = scmp.ne.s32.totalorder %s353, %s355
      %p359 = scmp.eq.s32.totalorder %s36, 0
      %p360 = por %p358, %p359
      %p361 = scmp.ne.s32.totalorder %s353, %s355
      %p362 = scmp.eq.s32.totalorder %s41, 1
      %p363 = por %p361, %p362
      %p364 = scmp.ne.s32.totalorder %s355, %s356
      %p365 = scmp.eq.s32.totalorder %s41, 0
      %p366 = por %p364, %p365
      %p367 = scmp.ne.s32.totalorder %s355, %s356
      %p368 = scmp.eq.s32.totalorder %s42, 1
      %p369 = por %p367, %p368
      %p371 = scmp.ne.s32.totalorder %s356, %s370
      %p372 = scmp.eq.s32.totalorder %s42, 0
      %p373 = por %p371, %p372
      %s375 = sadd.s32 %s374, 1
      %p378 = scmp.eq.s32.totalorder %s36, 1
      %p379 = scmp.ne.s32.totalorder %s374, %s376
      %p380 = scmp.eq.s32.totalorder %s36, 0
      %p381 = por %p379, %p380
      %p382 = scmp.ne.s32.totalorder %s374, %s376
      %p383 = scmp.eq.s32.totalorder %s41, 1
      %p384 = por %p382, %p383
      %p385 = scmp.ne.s32.totalorder %s376, %s377
      %p386 = scmp.eq.s32.totalorder %s41, 0
      %p387 = por %p385, %p386
      %p388 = scmp.ne.s32.totalorder %s376, %s377
      %p389 = scmp.eq.s32.totalorder %s42, 1
      %p390 = por %p388, %p389
      %p392 = scmp.ne.s32.totalorder %s377, %s391
      %p393 = scmp.eq.s32.totalorder %s42, 0
      %p394 = por %p392, %p393
      %s396 = sadd.s32 %s395, 1
      %p399 = scmp.eq.s32.totalorder %s36, 1
      %p400 = scmp.ne.s32.totalorder %s395, %s397
      %p401 = scmp.eq.s32.totalorder %s36, 0
      %p402 = por %p400, %p401
      %p403 = scmp.ne.s32.totalorder %s395, %s397
      %p404 = scmp.eq.s32.totalorder %s41, 1
      %p405 = por %p403, %p404
      %p406 = scmp.ne.s32.totalorder %s397, %s398
      %p407 = scmp.eq.s32.totalorder %s41, 0
      %p408 = por %p406, %p407
      %p409 = scmp.ne.s32.totalorder %s397, %s398
      %p410 = scmp.eq.s32.totalorder %s42, 1
      %p411 = por %p409, %p410
      %p413 = scmp.ne.s32.totalorder %s398, %s412
      %p414 = scmp.eq.s32.totalorder %s42, 0
      %p415 = por %p413, %p414
      %s416 = ssub.s32 %s36, %s43
      %p417 = scmp.eq.s32.totalorder %s416, 0
      %s419 = sadd.s32 %s418, 1
      %s420 = scalar_select %p417, %s418, %s419
      %p423 = pneg %p417
      %p424 = scmp.eq.s32.totalorder %s36, 1
      %p425 = por %p423, %p424
      %p426 = scmp.ne.s32.totalorder %s418, %s421
      %p427 = scmp.eq.s32.totalorder %s36, 0
      %p428 = por %p426, %p427
      %p429 = scmp.ne.s32.totalorder %s418, %s421
      %p430 = scmp.eq.s32.totalorder %s41, 1
      %p431 = por %p429, %p430
      %p432 = scmp.ne.s32.totalorder %s421, %s422
      %p433 = scmp.eq.s32.totalorder %s41, 0
      %p434 = por %p432, %p433
      %p435 = scmp.ne.s32.totalorder %s421, %s422
      %p436 = scmp.eq.s32.totalorder %s42, 1
      %p437 = por %p435, %p436
      %p439 = scmp.ne.s32.totalorder %s422, %s438
      %p440 = scmp.eq.s32.totalorder %s42, 0
      %p441 = por %p439, %p440
      %p442 = scmp.le.s32.totalorder 1, %s36
      %p443 = scmp.lt.s32.totalorder %s36, 3
      %p444 = pnand %p442, %p443
      %p445 = pneg %p444
      // Predicated region
      $region9: #{tpu_custom_call.1} parent=5 // pred_check
        _
      $region10: #{tpu_custom_call.1} parent=5 // pred_check_branch
        %447 = sbr.rel (%p444) target = $region12
      $region11: #{tpu_custom_call.1} parent=5 // pred_region
        %s448 = ssub.s32 %s36, 1
        // Predicated region
        $region13: #{tpu_custom_call.1} parent=11 // pred_check
          %p449 = pneg %p135
        $region14: #{tpu_custom_call.1} parent=11 // pred_check_branch
          %451 = sbr.rel (%p449) target = $region16
        $region15: #{tpu_custom_call.1} parent=11 // pred_region
          %s453 = ssub.s32 256, 256
          %454 = vsyncadd [#allocation9], %s453
          %s455 = sshll.u32 [#allocation8], 4
          %s456 = int_to_ptr.vmem [resolvable:$true] %s455
          %461 = dma.hbm_to_vmem [thread:$0]  %s3, 256, %s456, [#allocation9], 64, 64, 4
        $region16: #{tpu_custom_call.1} parent=11 // pred_fallthru
          _
        // Predicated region
        $region17: #{tpu_custom_call.1} parent=11 // pred_check
          %p462 = pneg %p156
        $region18: #{tpu_custom_call.1} parent=11 // pred_check_branch
          %464 = sbr.rel (%p462) target = $region20
        $region19: #{tpu_custom_call.1} parent=11 // pred_region
          %s466 = ssub.s32 16, 16
          %467 = vsyncadd [#allocation9], %s466
          %s469 = sshll.u32 [#allocation10], 4
          %s470 = int_to_ptr.vmem [resolvable:$true] %s469
          %472 = dma.hbm_to_vmem [thread:$0]  %s4, 16, %s470, [#allocation9]
        $region20: #{tpu_custom_call.1} parent=11 // pred_fallthru
          _
        // Predicated region
        $region21: #{tpu_custom_call.1} parent=11 // pred_check
          %p473 = pneg %p177
        $region22: #{tpu_custom_call.1} parent=11 // pred_check_branch
          %475 = sbr.rel (%p473) target = $region24
        $region23: #{tpu_custom_call.1} parent=11 // pred_region
          %s477 = ssub.s32 256, 256
          %478 = vsyncadd [#allocation12], %s477
          %s479 = sshll.u32 [#allocation11], 4
          %s480 = int_to_ptr.vmem [resolvable:$true] %s479
          %485 = dma.hbm_to_vmem [thread:$0]  %s5, 256, %s480, [#allocation12], 64, 64, 4
        $region24: #{tpu_custom_call.1} parent=11 // pred_fallthru
          _
        // Predicated region
        $region25: #{tpu_custom_call.1} parent=11 // pred_check
          %p486 = pneg %p198
        $region26: #{tpu_custom_call.1} parent=11 // pred_check_branch
          %488 = sbr.rel (%p486) target = $region28
        $region27: #{tpu_custom_call.1} parent=11 // pred_region
          %s490 = ssub.s32 16, 16
          %491 = vsyncadd [#allocation12], %s490
          %s493 = sshll.u32 [#allocation13], 4
          %s494 = int_to_ptr.vmem [resolvable:$true] %s493
          %496 = dma.hbm_to_vmem [thread:$0]  %s6, 16, %s494, [#allocation12]
        $region28: #{tpu_custom_call.1} parent=11 // pred_fallthru
          _
        // Predicated region
        $region29: #{tpu_custom_call.1} parent=11 // pred_check
          %p497 = pneg %p219
        $region30: #{tpu_custom_call.1} parent=11 // pred_check_branch
          %499 = sbr.rel (%p497) target = $region32
        $region31: #{tpu_custom_call.1} parent=11 // pred_region
          %s501 = ssub.s32 16, 16
          %502 = vsyncadd [#allocation15], %s501
          %s504 = sshll.u32 [#allocation14], 4
          %s505 = int_to_ptr.vmem [resolvable:$true] %s504
          %507 = dma.hbm_to_vmem [thread:$0]  %s7, 16, %s505, [#allocation15]
        $region32: #{tpu_custom_call.1} parent=11 // pred_fallthru
          _
        // Predicated region
        $region33: #{tpu_custom_call.1} parent=11 // pred_check
          %p508 = pneg %p240
        $region34: #{tpu_custom_call.1} parent=11 // pred_check_branch
          %510 = sbr.rel (%p508) target = $region36
        $region35: #{tpu_custom_call.1} parent=11 // pred_region
          %s512 = ssub.s32 16, 16
          %513 = vsyncadd [#allocation15], %s512
          %s515 = sshll.u32 [#allocation16], 4
          %s516 = int_to_ptr.vmem [resolvable:$true] %s515
          %518 = dma.hbm_to_vmem [thread:$0]  %s8, 16, %s516, [#allocation15]
        $region36: #{tpu_custom_call.1} parent=11 // pred_fallthru
          _
        // Predicated region
        $region37: #{tpu_custom_call.1} parent=11 // pred_check
          %p519 = pneg %p261
        $region38: #{tpu_custom_call.1} parent=11 // pred_check_branch
          %521 = sbr.rel (%p519) target = $region40
        $region39: #{tpu_custom_call.1} parent=11 // pred_region
          _
        $region40: #{tpu_custom_call.1} parent=11 // pred_fallthru
          _
        // Predicated region
        $region41: #{tpu_custom_call.1} parent=11 // pred_check
          %p522 = pneg %p282
        $region42: #{tpu_custom_call.1} parent=11 // pred_check_branch
          %524 = sbr.rel (%p522) target = $region44
        $region43: #{tpu_custom_call.1} parent=11 // pred_region
          _
        $region44: #{tpu_custom_call.1} parent=11 // pred_fallthru
          _
        // Predicated region
        $region45: #{tpu_custom_call.1} parent=11 // pred_check
          %p525 = pneg %p303
        $region46: #{tpu_custom_call.1} parent=11 // pred_check_branch
          %527 = sbr.rel (%p525) target = $region48
        $region47: #{tpu_custom_call.1} parent=11 // pred_region
          %s529 = ssub.s32 384, 384
          %530 = vsyncadd [#allocation18], %s529
          %s531 = sshll.u32 [#allocation17], 4
          %s532 = int_to_ptr.vmem [resolvable:$true] %s531
          %537 = dma.hbm_to_vmem [thread:$0]  %s11, 384, %s532, [#allocation18], 64, 64, 4
        $region48: #{tpu_custom_call.1} parent=11 // pred_fallthru
          _
        // Predicated region
        $region49: #{tpu_custom_call.1} parent=11 // pred_check
          %p538 = pneg %p324
        $region50: #{tpu_custom_call.1} parent=11 // pred_check_branch
          %540 = sbr.rel (%p538) target = $region52
        $region51: #{tpu_custom_call.1} parent=11 // pred_region
          _
        $region52: #{tpu_custom_call.1} parent=11 // pred_fallthru
          _
        // Predicated region
        $region53: #{tpu_custom_call.1} parent=11 // pred_check
          %p541 = pneg %p345
        $region54: #{tpu_custom_call.1} parent=11 // pred_check_branch
          %543 = sbr.rel (%p541) target = $region56
        $region55: #{tpu_custom_call.1} parent=11 // pred_region
          %s545 = ssub.s32 256, 256
          %546 = vsyncadd [#allocation18], %s545
          %s547 = sshll.u32 [#allocation19], 4
          %s548 = int_to_ptr.vmem [resolvable:$true] %s547
          %553 = dma.hbm_to_vmem [thread:$0]  %s13, 256, %s548, [#allocation18], 64, 64, 4
        $region56: #{tpu_custom_call.1} parent=11 // pred_fallthru
          _
        // Predicated region
        $region57: #{tpu_custom_call.1} parent=11 // pred_check
          %p554 = pneg %p366
        $region58: #{tpu_custom_call.1} parent=11 // pred_check_branch
          %556 = sbr.rel (%p554) target = $region60
        $region59: #{tpu_custom_call.1} parent=11 // pred_region
          _
        $region60: #{tpu_custom_call.1} parent=11 // pred_fallthru
          _
        // Predicated region
        $region61: #{tpu_custom_call.1} parent=11 // pred_check
          %p557 = pneg %p387
        $region62: #{tpu_custom_call.1} parent=11 // pred_check_branch
          %559 = sbr.rel (%p557) target = $region64
        $region63: #{tpu_custom_call.1} parent=11 // pred_region
          _
        $region64: #{tpu_custom_call.1} parent=11 // pred_fallthru
          _
        // Predicated region
        $region65: #{tpu_custom_call.1} parent=11 // pred_check
          %p560 = pneg %p408
        $region66: #{tpu_custom_call.1} parent=11 // pred_check_branch
          %562 = sbr.rel (%p560) target = $region68
        $region67: #{tpu_custom_call.1} parent=11 // pred_region
          _
        $region68: #{tpu_custom_call.1} parent=11 // pred_fallthru
          _
      $region12: #{tpu_custom_call.1} parent=5 // pred_fallthru
        _
      %p563 = scmp.lt.s32.totalorder %s36, 2
      // Predicated region
      $region69: #{tpu_custom_call.1} parent=5 // pred_check
        %p564 = pneg %p563
      $region70: #{tpu_custom_call.1} parent=5 // pred_check_branch
        %566 = sbr.rel (%p564) target = $region72
      $region71: #{tpu_custom_call.1} parent=5 // pred_region
        // Predicated region
        $region73: #{tpu_custom_call.1} parent=71 // pred_check
          %p567 = pneg %p56
        $region74: #{tpu_custom_call.1} parent=71 // pred_check_branch
          %569 = sbr.rel (%p567) target = $region76
        $region75: #{tpu_custom_call.1} parent=71 // pred_region
          %s570 = sand.u32 %s46, 1
          %s571 = scalar_lea.sflag [#allocation3], %s570
          %s572 = sand.u32 %s46, 1
          %s573 = smul.addr %s572, 8
          %s574 = scalar_lea.vmem [#allocation2], %s573
          %s576 = ssub.s32 128, 128
          %577 = vsyncadd %s571, %s576
          %s578 = smul.addr %s36, 128
          %s579 = scalar_lea.hbm %s0, %s578
          %s581 = sshll.u32 %s574, 4
          %s582 = int_to_ptr.vmem [resolvable:$true] %s581
          %584 = dma.hbm_to_vmem [thread:$0]  %s579, 128, %s582, %s571
        $region76: #{tpu_custom_call.1} parent=71 // pred_fallthru
          _
        // Predicated region
        $region77: #{tpu_custom_call.1} parent=71 // pred_check
          %p585 = pneg %p82
        $region78: #{tpu_custom_call.1} parent=71 // pred_check_branch
          %587 = sbr.rel (%p585) target = $region80
        $region79: #{tpu_custom_call.1} parent=71 // pred_region
          %s588 = sand.u32 %s36, 1
          %s589 = scalar_lea.sflag [#allocation6], %s588
          %s590 = sand.u32 %s72, 1
          %s591 = scalar_lea.vmem [#allocation5], %s590
          %s593 = ssub.s32 16, 16
          %594 = vsyncadd %s589, %s593
          %s595 = smul.addr %s36, 16
          %s596 = scalar_lea.hbm %s1, %s595
          %s598 = sshll.u32 %s591, 4
          %s599 = int_to_ptr.vmem [resolvable:$true] %s598
          %601 = dma.hbm_to_vmem [thread:$0]  %s596, 16, %s599, %s589
        $region80: #{tpu_custom_call.1} parent=71 // pred_fallthru
          _
        // Predicated region
        $region81: #{tpu_custom_call.1} parent=71 // pred_check
          %p602 = pneg %p108
        $region82: #{tpu_custom_call.1} parent=71 // pred_check_branch
          %604 = sbr.rel (%p602) target = $region84
        $region83: #{tpu_custom_call.1} parent=71 // pred_region
          %s605 = sand.u32 %s36, 1
          %s606 = scalar_lea.sflag [#allocation6], %s605
          %s607 = sand.u32 %s98, 1
          %s608 = smul.addr %s607, 16
          %s609 = scalar_lea.vmem [#allocation7], %s608
          %s611 = ssub.s32 256, 256
          %612 = vsyncadd %s606, %s611
          %s613 = smul.addr %s36, 2
          %s614 = smul.addr %s613, 128
          %s615 = scalar_lea.hbm %s2, %s614
          %s616 = sshll.u32 %s609, 4
          %s617 = int_to_ptr.vmem [resolvable:$true] %s616
          %622 = dma.hbm_to_vmem [thread:$0]  %s615, 256, %s617, %s606, 128, 128, 8
        $region84: #{tpu_custom_call.1} parent=71 // pred_fallthru
          _
      $region72: #{tpu_custom_call.1} parent=5 // pred_fallthru
        _
      %p623 = scmp.le.s32.totalorder 1, %s36
      %p624 = scmp.lt.s32.totalorder %s36, 3
      %p625 = pnand %p623, %p624
      %p626 = pneg %p625
      // Predicated region
      $region85: #{tpu_custom_call.1} parent=5 // pred_check
        _
      $region86: #{tpu_custom_call.1} parent=5 // pred_check_branch
        %628 = sbr.rel (%p625) target = $region88
      $region87: #{tpu_custom_call.1} parent=5 // pred_region
        %s629 = ssub.s32 %s36, 1
        %s630 = sand.u32 %s49, 1
        %s631 = scalar_lea.sflag [#allocation3], %s630
        %s632 = sand.u32 %s49, 1
        %s633 = smul.addr %s632, 8
        %s634 = scalar_lea.vmem [#allocation2], %s633
        // Predicated region
        $region89: #{tpu_custom_call.1} parent=87 // pred_check
          %p635 = pneg %p62
        $region90: #{tpu_custom_call.1} parent=87 // pred_check_branch
          %637 = sbr.rel (%p635) target = $region92
        $region91: #{tpu_custom_call.1} parent=87 // pred_region
          %638 = dma.done %s631, 128
        $region92: #{tpu_custom_call.1} parent=87 // pred_fallthru
          _
        %s639 = sand.u32 %s41, 1
        %s640 = scalar_lea.sflag [#allocation6], %s639
        %s641 = sand.u32 %s75, 1
        %s642 = scalar_lea.vmem [#allocation5], %s641
        // Predicated region
        $region93: #{tpu_custom_call.1} parent=87 // pred_check
          %p643 = pneg %p88
        $region94: #{tpu_custom_call.1} parent=87 // pred_check_branch
          %645 = sbr.rel (%p643) target = $region96
        $region95: #{tpu_custom_call.1} parent=87 // pred_region
          %646 = dma.done %s640, 16
        $region96: #{tpu_custom_call.1} parent=87 // pred_fallthru
          _
        %s647 = sand.u32 %s41, 1
        %s648 = scalar_lea.sflag [#allocation6], %s647
        %s649 = sand.u32 %s101, 1
        %s650 = smul.addr %s649, 16
        %s651 = scalar_lea.vmem [#allocation7], %s650
        // Predicated region
        $region97: #{tpu_custom_call.1} parent=87 // pred_check
          %p652 = pneg %p114
        $region98: #{tpu_custom_call.1} parent=87 // pred_check_branch
          %654 = sbr.rel (%p652) target = $region100
        $region99: #{tpu_custom_call.1} parent=87 // pred_region
          %655 = dma.done %s648, 256
        $region100: #{tpu_custom_call.1} parent=87 // pred_fallthru
          _
        // Predicated region
        $region101: #{tpu_custom_call.1} parent=87 // pred_check
          %p656 = pneg %p135
        $region102: #{tpu_custom_call.1} parent=87 // pred_check_branch
          %658 = sbr.rel (%p656) target = $region104
        $region103: #{tpu_custom_call.1} parent=87 // pred_region
          %659 = dma.done [#allocation9], 256
        $region104: #{tpu_custom_call.1} parent=87 // pred_fallthru
          _
        // Predicated region
        $region105: #{tpu_custom_call.1} parent=87 // pred_check
          %p660 = pneg %p156
        $region106: #{tpu_custom_call.1} parent=87 // pred_check_branch
          %662 = sbr.rel (%p660) target = $region108
        $region107: #{tpu_custom_call.1} parent=87 // pred_region
          %663 = dma.done [#allocation9], 16
        $region108: #{tpu_custom_call.1} parent=87 // pred_fallthru
          _
        // Predicated region
        $region109: #{tpu_custom_call.1} parent=87 // pred_check
          %p664 = pneg %p177
        $region110: #{tpu_custom_call.1} parent=87 // pred_check_branch
          %666 = sbr.rel (%p664) target = $region112
        $region111: #{tpu_custom_call.1} parent=87 // pred_region
          %667 = dma.done [#allocation12], 256
        $region112: #{tpu_custom_call.1} parent=87 // pred_fallthru
          _
        // Predicated region
        $region113: #{tpu_custom_call.1} parent=87 // pred_check
          %p668 = pneg %p198
        $region114: #{tpu_custom_call.1} parent=87 // pred_check_branch
          %670 = sbr.rel (%p668) target = $region116
        $region115: #{tpu_custom_call.1} parent=87 // pred_region
          %671 = dma.done [#allocation12], 16
        $region116: #{tpu_custom_call.1} parent=87 // pred_fallthru
          _
        // Predicated region
        $region117: #{tpu_custom_call.1} parent=87 // pred_check
          %p672 = pneg %p219
        $region118: #{tpu_custom_call.1} parent=87 // pred_check_branch
          %674 = sbr.rel (%p672) target = $region120
        $region119: #{tpu_custom_call.1} parent=87 // pred_region
          %675 = dma.done [#allocation15], 16
        $region120: #{tpu_custom_call.1} parent=87 // pred_fallthru
          _
        // Predicated region
        $region121: #{tpu_custom_call.1} parent=87 // pred_check
          %p676 = pneg %p240
        $region122: #{tpu_custom_call.1} parent=87 // pred_check_branch
          %678 = sbr.rel (%p676) target = $region124
        $region123: #{tpu_custom_call.1} parent=87 // pred_region
          %679 = dma.done [#allocation15], 16
        $region124: #{tpu_custom_call.1} parent=87 // pred_fallthru
          _
        // Predicated region
        $region125: #{tpu_custom_call.1} parent=87 // pred_check
          %p680 = pneg %p303
        $region126: #{tpu_custom_call.1} parent=87 // pred_check_branch
          %682 = sbr.rel (%p680) target = $region128
        $region127: #{tpu_custom_call.1} parent=87 // pred_region
          %683 = dma.done [#allocation18], 384
        $region128: #{tpu_custom_call.1} parent=87 // pred_fallthru
          _
        // Predicated region
        $region129: #{tpu_custom_call.1} parent=87 // pred_check
          %p684 = pneg %p345
        $region130: #{tpu_custom_call.1} parent=87 // pred_check_branch
          %686 = sbr.rel (%p684) target = $region132
        $region131: #{tpu_custom_call.1} parent=87 // pred_region
          %687 = dma.done [#allocation18], 256
        $region132: #{tpu_custom_call.1} parent=87 // pred_fallthru
          _
        %s688 = sand.u32 %s49, 1
        %s689 = scalar_lea.sflag [#allocation3], %s688
        %s690 = sand.u32 %s49, 1
        %s691 = smul.addr %s690, 8
        %s692 = scalar_lea.vmem [#allocation2], %s691
        %p693 = pneg %p62
        %p694 = pneg %p59
        %s695 = sand.u32 %s41, 1
        %s696 = scalar_lea.sflag [#allocation6], %s695
        %s697 = sand.u32 %s75, 1
        %s698 = scalar_lea.vmem [#allocation5], %s697
        %p699 = pneg %p88
        %p700 = pneg %p85
        %s701 = sand.u32 %s41, 1
        %s702 = scalar_lea.sflag [#allocation6], %s701
        %s703 = sand.u32 %s101, 1
        %s704 = smul.addr %s703, 16
        %s705 = scalar_lea.vmem [#allocation7], %s704
        %p706 = pneg %p114
        %p707 = pneg %p111
        %p708 = pneg %p135
        %p709 = pneg %p132
        %p710 = pneg %p156
        %p711 = pneg %p153
        %p712 = pneg %p177
        %p713 = pneg %p174
        %p714 = pneg %p198
        %p715 = pneg %p195
        %p716 = pneg %p219
        %p717 = pneg %p216
        %p718 = pneg %p240
        %p719 = pneg %p237
        %p720 = pneg %p261
        %p721 = pneg %p258
        %p722 = pneg %p282
        %p723 = pneg %p279
        %p724 = pneg %p303
        %p725 = pneg %p300
        %p726 = pneg %p324
        %p727 = pneg %p321
        %p728 = pneg %p345
        %p729 = pneg %p342
        %p730 = pneg %p366
        %p731 = pneg %p363
        %p732 = pneg %p387
        %p733 = pneg %p384
        %p734 = pneg %p408
        %p735 = pneg %p405
        %p736 = pneg %p434
        %p737 = pneg %p431
        %s738 = sand.u32 %s421, 1
        %s739 = scalar_lea.sflag [#allocation4], %s738
        %s740 = sand.u32 %s421, 1
        %s741 = smul.addr %s740, 8
        %s742 = scalar_lea.vmem [#allocation20], %s741
        %v744 = vld [vmem:[%s634] sm:$0xff]
        %v745 = vld [vmem:[%s651] sm:$0xff]
        %v746 = vld [vmem:[%s651 + $0x8] sm:$0xff]
        %v747 = vpack.c.bf16 %v744, %v744
        %v748 = vld [vmem:[#allocation8] sm:$0xf]
        %v749 = vld [vmem:[#allocation8 + $0x4] sm:$0xf]
        %v750 = vld [vmem:[#allocation8 + $0x8] sm:$0xf]
        %v751 = vld [vmem:[#allocation8 + $0xc] sm:$0xf]
        %v752 = vld [vmem:[#allocation10] sm:$0x1]
        %v754 = vlaneseq
        %v755 = vshrl.u32 %v754, 7
        %v756 = vsub.s32 0, %v755
        %v757 = vrot.slane %v752, %v756
        %v763 = vunpack.c.l.b16 %v748
        %v764 = vunpack.c.l.b16 %v749
        %v765 = vunpack.c.l.b16 %v750
        %v766 = vunpack.c.l.b16 %v751
        %v767 = vpack.c.b16 %v764, %v763
        %v768 = vpack.c.b16 %v766, %v765
        %vm771 = vcmask 261120
        %v773 = vsel %vm771, %v747, 0
        %775 = vmatprep.subr.bf16.mxu0 0
        %776 = vmatpush1.bf16.msra.mxu0 0
        %777 = vmatprep.subr.bf16.mxu0 0
        %778 = vmatpush1.bf16.msra.mxu0 0
        %779 = vmatprep.subr.bf16.mxu0 0
        %780 = vmatpush1.bf16.msra.mxu0 0
        %781 = vmatprep.subr.bf16.mxu0 0
        %782 = vmatpush1.bf16.msra.mxu0 0
        %783 = vmatprep.subr.bf16.mxu0 0
        %784 = vmatpush1.bf16.msra.mxu0 0
        %785 = vmatprep.subr.bf16.mxu0 0
        %786 = vmatpush1.bf16.msra.mxu0 0
        %787 = vmatprep.subr.bf16.mxu0 0
        %788 = vmatpush1.bf16.msra.mxu0 %v768
        %789 = vmatprep.subr.bf16.mxu0 0
        %790 = vmatpush1.bf16.msra.mxu0 %v767
        %791 = vmatprep.subr.bf16.mxu0 0
        %792 = vmatpush2.bf16.msra.mxu0 0
        %793 = vmatprep.subr.bf16.mxu0 0
        %794 = vmatpush2.bf16.msra.mxu0 0
        %795 = vmatprep.subr.bf16.mxu0 0
        %796 = vmatpush2.bf16.msra.mxu0 0
        %797 = vmatprep.subr.bf16.mxu0 0
        %798 = vmatpush2.bf16.msra.mxu0 0
        %799 = vmatprep.subr.bf16.mxu0 0
        %800 = vmatpush2.bf16.msra.mxu0 0
        %801 = vmatprep.subr.bf16.mxu0 0
        %802 = vmatpush2.bf16.msra.mxu0 0
        %803 = vmatprep.subr.bf16.mxu0 0
        %804 = vmatpush2.bf16.msra.mxu0 0
        %805 = vmatprep.subr.bf16.mxu0 0
        %806 = vmatpush2.bf16.msra.mxu0 0
        %807 = vmatprep.mubr.bf16.mxu0 0
        %808 = vmatmul.mubr.bf16.gmra.mxu0 %v773
        %v809 = vpop.f32.mrf.mxu0
        %v810 = vadd.f32 %v757, %v809
        %v811 = vpop.f32.mrf.mxu0
        %v812 = vpop.f32.mrf.mxu0
        %v813 = vpop.f32.mrf.mxu0
        %814 = vdwg.mxu0
        %v815 = vpack.c.bf16 %v810, %v810
        %v816 = vlaneseq
        %v817 = vshrl.u32 %v816, 7
        %v818 = vlaneseq
        %v819 = vand.u32 %v818, 127
        %vm820 = vcmp.gt.s32.totalorder %v819, %v817
        %v821 = vld [vmem:[%s642] sm:$0x1]
        %vm822 = vcmp.gt.s32.totalorder %v821, 0
        %v823 = vsel %vm822, 1, 0
        %v824 = vlaneseq
        %v825 = vshrl.u32 %v824, 7
        %v826 = vsub.s32 0, %v825
        %v827 = vrot.slane %v823, %v826
        %vm828 = vcmp.eq.s32.totalorder %v827, 1
        %vm829 = vmor %vm820, %vm828
        %v830 = vld [vmem:[#allocation11] sm:$0xf]
        %v831 = vld [vmem:[#allocation11 + $0x4] sm:$0xf]
        %v832 = vld [vmem:[#allocation11 + $0x8] sm:$0xf]
        %v833 = vld [vmem:[#allocation11 + $0xc] sm:$0xf]
        %v834 = vld [vmem:[#allocation13] sm:$0x1]
        %836 = vrot.lane.b32.xlu0 %v815, 120
        %v837 = vpop.permute.xlu0 %836
        %838 = vrot.lane.b32.xlu0 %v815, 112
        %v839 = vpop.permute.xlu0 %838
        %840 = vrot.lane.b32.xlu0 %v815, 104
        %v841 = vpop.permute.xlu0 %840
        %842 = vrot.lane.b32.xlu0 %v815, 96
        %v843 = vpop.permute.xlu0 %842
        %844 = vrot.lane.b32.xlu0 %v837, 96
        %v845 = vpop.permute.xlu0 %844
        %846 = vrot.lane.b32.xlu0 %v839, 96
        %v847 = vpop.permute.xlu0 %846
        %848 = vrot.lane.b32.xlu0 %v841, 96
        %v849 = vpop.permute.xlu0 %848
        %854 = vxpose.xlu0.c.b16.start [1/8] %v843, 128
        %855 = vxpose.xlu0.c.b16.cont [2/8] 0, 128
        %856 = vxpose.xlu0.c.b16.cont [3/8] 0, 128
        %857 = vxpose.xlu0.c.b16.cont [4/8] 0, 128
        %858 = vxpose.xlu0.c.b16.cont [5/8] 0, 128
        %859 = vxpose.xlu0.c.b16.cont [6/8] 0, 128
        %860 = vxpose.xlu0.c.b16.cont [7/8] 0, 128
        %861 = vxpose.xlu0.c.b16.end [8/8] 0, 128
        %v862 = vpop.trf.xlu0
        %v863 = vpop.trf.xlu0
        %v864 = vpop.trf.xlu0
        %v865 = vpop.trf.xlu0
        %v866 = vpop.trf.xlu0
        %v867 = vpop.trf.xlu0
        %v868 = vpop.trf.xlu0
        %v869 = vpop.trf.xlu0
        %870 = vxpose.xlu0.c.b16.start [1/8] %v845, 128
        %871 = vxpose.xlu0.c.b16.cont [2/8] 0, 128
        %872 = vxpose.xlu0.c.b16.cont [3/8] 0, 128
        %873 = vxpose.xlu0.c.b16.cont [4/8] 0, 128
        %874 = vxpose.xlu0.c.b16.cont [5/8] 0, 128
        %875 = vxpose.xlu0.c.b16.cont [6/8] 0, 128
        %876 = vxpose.xlu0.c.b16.cont [7/8] 0, 128
        %877 = vxpose.xlu0.c.b16.end [8/8] 0, 128
        %v878 = vpop.trf.xlu0
        %v879 = vpop.trf.xlu0
        %v880 = vpop.trf.xlu0
        %v881 = vpop.trf.xlu0
        %v882 = vpop.trf.xlu0
        %v883 = vpop.trf.xlu0
        %v884 = vpop.trf.xlu0
        %v885 = vpop.trf.xlu0
        %886 = vxpose.xlu0.c.b16.start [1/8] %v847, 128
        %887 = vxpose.xlu0.c.b16.cont [2/8] 0, 128
        %888 = vxpose.xlu0.c.b16.cont [3/8] 0, 128
        %889 = vxpose.xlu0.c.b16.cont [4/8] 0, 128
        %890 = vxpose.xlu0.c.b16.cont [5/8] 0, 128
        %891 = vxpose.xlu0.c.b16.cont [6/8] 0, 128
        %892 = vxpose.xlu0.c.b16.cont [7/8] 0, 128
        %893 = vxpose.xlu0.c.b16.end [8/8] 0, 128
        %v894 = vpop.trf.xlu0
        %v895 = vpop.trf.xlu0
        %v896 = vpop.trf.xlu0
        %v897 = vpop.trf.xlu0
        %v898 = vpop.trf.xlu0
        %v899 = vpop.trf.xlu0
        %v900 = vpop.trf.xlu0
        %v901 = vpop.trf.xlu0
        %902 = vxpose.xlu0.c.b16.start [1/8] %v849, 128
        %903 = vxpose.xlu0.c.b16.cont [2/8] 0, 128
        %904 = vxpose.xlu0.c.b16.cont [3/8] 0, 128
        %905 = vxpose.xlu0.c.b16.cont [4/8] 0, 128
        %906 = vxpose.xlu0.c.b16.cont [5/8] 0, 128
        %907 = vxpose.xlu0.c.b16.cont [6/8] 0, 128
        %908 = vxpose.xlu0.c.b16.cont [7/8] 0, 128
        %909 = vxpose.xlu0.c.b16.end [8/8] 0, 128
        %v910 = vpop.trf.xlu0
        %v911 = vpop.trf.xlu0
        %v912 = vpop.trf.xlu0
        %v913 = vpop.trf.xlu0
        %v914 = vpop.trf.xlu0
        %v915 = vpop.trf.xlu0
        %v916 = vpop.trf.xlu0
        %v917 = vpop.trf.xlu0
        %vm918 = vcmask 64512
        %v920 = vsel %vm918, %v815, 0
        %vm922 = vcmask 1043456
        %v924 = vsel %vm922, %v862, 0
        %926 = vmatprep.subr.bf16.mxu0 0
        %927 = vmatpush1.bf16.msra.mxu0 0
        %928 = vmatprep.subr.bf16.mxu0 0
        %929 = vmatpush1.bf16.msra.mxu0 0
        %930 = vmatprep.subr.bf16.mxu0 0
        %931 = vmatpush1.bf16.msra.mxu0 0
        %932 = vmatprep.subr.bf16.mxu0 0
        %933 = vmatpush1.bf16.msra.mxu0 0
        %934 = vmatprep.subr.bf16.mxu0 0
        %935 = vmatpush1.bf16.msra.mxu0 0
        %936 = vmatprep.subr.bf16.mxu0 0
        %937 = vmatpush1.bf16.msra.mxu0 0
        %938 = vmatprep.subr.bf16.mxu0 0
        %939 = vmatpush1.bf16.msra.mxu0 0
        %940 = vmatprep.subr.bf16.mxu0 0
        %941 = vmatpush1.bf16.msra.mxu0 %v924
        %942 = vmatprep.subr.bf16.mxu0 0
        %943 = vmatpush2.bf16.msra.mxu0 0
        %944 = vmatprep.subr.bf16.mxu0 0
        %945 = vmatpush2.bf16.msra.mxu0 0
        %946 = vmatprep.subr.bf16.mxu0 0
        %947 = vmatpush2.bf16.msra.mxu0 0
        %948 = vmatprep.subr.bf16.mxu0 0
        %949 = vmatpush2.bf16.msra.mxu0 0
        %950 = vmatprep.subr.bf16.mxu0 0
        %951 = vmatpush2.bf16.msra.mxu0 0
        %952 = vmatprep.subr.bf16.mxu0 0
        %953 = vmatpush2.bf16.msra.mxu0 0
        %954 = vmatprep.subr.bf16.mxu0 0
        %955 = vmatpush2.bf16.msra.mxu0 0
        %956 = vmatprep.subr.bf16.mxu0 0
        %957 = vmatpush2.bf16.msra.mxu0 0
        %958 = vmatprep.mubr.bf16.mxu0 0
        %959 = vmatmul.mubr.bf16.gmra.mxu0 %v920
        %v960 = vpop.f32.mrf.mxu0
        %v961 = vadd.f32 0.0, %v960
        %v962 = vpop.f32.mrf.mxu0
        %v963 = vpop.f32.mrf.mxu0
        %v964 = vpop.f32.mrf.mxu0
        %965 = vdwg.mxu0
        %v967 = vsel %vm918, %v837, 0
        %v970 = vsel %vm922, %v878, 0
        %972 = vmatprep.subr.bf16.mxu0 0
        %973 = vmatpush1.bf16.msra.mxu0 0
        %974 = vmatprep.subr.bf16.mxu0 0
        %975 = vmatpush1.bf16.msra.mxu0 0
        %976 = vmatprep.subr.bf16.mxu0 0
        %977 = vmatpush1.bf16.msra.mxu0 0
        %978 = vmatprep.subr.bf16.mxu0 0
        %979 = vmatpush1.bf16.msra.mxu0 0
        %980 = vmatprep.subr.bf16.mxu0 0
        %981 = vmatpush1.bf16.msra.mxu0 0
        %982 = vmatprep.subr.bf16.mxu0 0
        %983 = vmatpush1.bf16.msra.mxu0 0
        %984 = vmatprep.subr.bf16.mxu0 0
        %985 = vmatpush1.bf16.msra.mxu0 0
        %986 = vmatprep.subr.bf16.mxu0 0
        %987 = vmatpush1.bf16.msra.mxu0 %v970
        %988 = vmatprep.subr.bf16.mxu0 0
        %989 = vmatpush2.bf16.msra.mxu0 0
        %990 = vmatprep.subr.bf16.mxu0 0
        %991 = vmatpush2.bf16.msra.mxu0 0
        %992 = vmatprep.subr.bf16.mxu0 0
        %993 = vmatpush2.bf16.msra.mxu0 0
        %994 = vmatprep.subr.bf16.mxu0 0
        %995 = vmatpush2.bf16.msra.mxu0 0
        %996 = vmatprep.subr.bf16.mxu0 0
        %997 = vmatpush2.bf16.msra.mxu0 0
        %998 = vmatprep.subr.bf16.mxu0 0
        %999 = vmatpush2.bf16.msra.mxu0 0
        %1000 = vmatprep.subr.bf16.mxu0 0
        %1001 = vmatpush2.bf16.msra.mxu0 0
        %1002 = vmatprep.subr.bf16.mxu0 0
        %1003 = vmatpush2.bf16.msra.mxu0 0
        %1004 = vmatprep.mubr.bf16.mxu0 0
        %1005 = vmatmul.mubr.bf16.gmra.mxu0 %v967
        %v1006 = vpop.f32.mrf.mxu0
        %v1007 = vadd.f32 0.0, %v1006
        %v1008 = vpop.f32.mrf.mxu0
        %v1009 = vpop.f32.mrf.mxu0
        %v1010 = vpop.f32.mrf.mxu0
        %1011 = vdwg.mxu0
        %v1013 = vsel %vm918, %v839, 0
        %v1016 = vsel %vm922, %v894, 0
        %1018 = vmatprep.subr.bf16.mxu0 0
        %1019 = vmatpush1.bf16.msra.mxu0 0
        %1020 = vmatprep.subr.bf16.mxu0 0
        %1021 = vmatpush1.bf16.msra.mxu0 0
        %1022 = vmatprep.subr.bf16.mxu0 0
        %1023 = vmatpush1.bf16.msra.mxu0 0
        %1024 = vmatprep.subr.bf16.mxu0 0
        %1025 = vmatpush1.bf16.msra.mxu0 0
        %1026 = vmatprep.subr.bf16.mxu0 0
        %1027 = vmatpush1.bf16.msra.mxu0 0
        %1028 = vmatprep.subr.bf16.mxu0 0
        %1029 = vmatpush1.bf16.msra.mxu0 0
        %1030 = vmatprep.subr.bf16.mxu0 0
        %1031 = vmatpush1.bf16.msra.mxu0 0
        %1032 = vmatprep.subr.bf16.mxu0 0
        %1033 = vmatpush1.bf16.msra.mxu0 %v1016
        %1034 = vmatprep.subr.bf16.mxu0 0
        %1035 = vmatpush2.bf16.msra.mxu0 0
        %1036 = vmatprep.subr.bf16.mxu0 0
        %1037 = vmatpush2.bf16.msra.mxu0 0
        %1038 = vmatprep.subr.bf16.mxu0 0
        %1039 = vmatpush2.bf16.msra.mxu0 0
        %1040 = vmatprep.subr.bf16.mxu0 0
        %1041 = vmatpush2.bf16.msra.mxu0 0
        %1042 = vmatprep.subr.bf16.mxu0 0
        %1043 = vmatpush2.bf16.msra.mxu0 0
        %1044 = vmatprep.subr.bf16.mxu0 0
        %1045 = vmatpush2.bf16.msra.mxu0 0
        %1046 = vmatprep.subr.bf16.mxu0 0
        %1047 = vmatpush2.bf16.msra.mxu0 0
        %1048 = vmatprep.subr.bf16.mxu0 0
        %1049 = vmatpush2.bf16.msra.mxu0 0
        %1050 = vmatprep.mubr.bf16.mxu0 0
        %1051 = vmatmul.mubr.bf16.gmra.mxu0 %v1013
        %v1052 = vpop.f32.mrf.mxu0
        %v1053 = vadd.f32 0.0, %v1052
        %v1054 = vpop.f32.mrf.mxu0
        %v1055 = vpop.f32.mrf.mxu0
        %v1056 = vpop.f32.mrf.mxu0
        %1057 = vdwg.mxu0
        %v1059 = vsel %vm918, %v841, 0
        %v1062 = vsel %vm922, %v910, 0
        %1064 = vmatprep.subr.bf16.mxu0 0
        %1065 = vmatpush1.bf16.msra.mxu0 0
        %1066 = vmatprep.subr.bf16.mxu0 0
        %1067 = vmatpush1.bf16.msra.mxu0 0
        %1068 = vmatprep.subr.bf16.mxu0 0
        %1069 = vmatpush1.bf16.msra.mxu0 0
        %1070 = vmatprep.subr.bf16.mxu0 0
        %1071 = vmatpush1.bf16.msra.mxu0 0
        %1072 = vmatprep.subr.bf16.mxu0 0
        %1073 = vmatpush1.bf16.msra.mxu0 0
        %1074 = vmatprep.subr.bf16.mxu0 0
        %1075 = vmatpush1.bf16.msra.mxu0 0
        %1076 = vmatprep.subr.bf16.mxu0 0
        %1077 = vmatpush1.bf16.msra.mxu0 0
        %1078 = vmatprep.subr.bf16.mxu0 0
        %1079 = vmatpush1.bf16.msra.mxu0 %v1062
        %1080 = vmatprep.subr.bf16.mxu0 0
        %1081 = vmatpush2.bf16.msra.mxu0 0
        %1082 = vmatprep.subr.bf16.mxu0 0
        %1083 = vmatpush2.bf16.msra.mxu0 0
        %1084 = vmatprep.subr.bf16.mxu0 0
        %1085 = vmatpush2.bf16.msra.mxu0 0
        %1086 = vmatprep.subr.bf16.mxu0 0
        %1087 = vmatpush2.bf16.msra.mxu0 0
        %1088 = vmatprep.subr.bf16.mxu0 0
        %1089 = vmatpush2.bf16.msra.mxu0 0
        %1090 = vmatprep.subr.bf16.mxu0 0
        %1091 = vmatpush2.bf16.msra.mxu0 0
        %1092 = vmatprep.subr.bf16.mxu0 0
        %1093 = vmatpush2.bf16.msra.mxu0 0
        %1094 = vmatprep.subr.bf16.mxu0 0
        %1095 = vmatpush2.bf16.msra.mxu0 0
        %1096 = vmatprep.mubr.bf16.mxu0 0
        %1097 = vmatmul.mubr.bf16.gmra.mxu0 %v1059
        %v1098 = vpop.f32.mrf.mxu0
        %v1099 = vadd.f32 0.0, %v1098
        %v1100 = vpop.f32.mrf.mxu0
        %v1101 = vpop.f32.mrf.mxu0
        %v1102 = vpop.f32.mrf.mxu0
        %1103 = vdwg.mxu0
        %v1104 = vsel %vm829, 1, 0
        %vm1105 = vcmp.eq.s32.totalorder %v1104, 1
        %v1106 = vsel %vm1105, -1e+30, %v961
        %v1107 = vsel %vm1105, -1e+30, %v1007
        %v1108 = vsel %vm1105, -1e+30, %v1053
        %v1109 = vsel %vm1105, -1e+30, %v1099
        %v1110 = vsel %vm918, %v1106, -inf
        %1111 = vmax.xlane.f32.xlu0 %v1110
        %v1112 = vpop.xlane.xlu0 %1111
        %v1113 = vsel %vm918, %v1107, -inf
        %1114 = vmax.xlane.f32.xlu0 %v1113
        %v1115 = vpop.xlane.xlu0 %1114
        %v1116 = vsel %vm918, %v1108, -inf
        %1117 = vmax.xlane.f32.xlu0 %v1116
        %v1118 = vpop.xlane.xlu0 %1117
        %v1119 = vsel %vm918, %v1109, -inf
        %1120 = vmax.xlane.f32.xlu0 %v1119
        %v1121 = vpop.xlane.xlu0 %1120
        %v1122 = vsub.f32 %v1106, %v1112
        %v1123 = vsub.f32 %v1107, %v1115
        %v1124 = vsub.f32 %v1108, %v1118
        %v1125 = vsub.f32 %v1109, %v1121
        %v1126 = vmul.f32 %v1122, 1.442695
        %v1127 = vpow.pop %v1126
        %v1128 = vmul.f32 %v1123, 1.442695
        %v1129 = vpow.pop %v1128
        %v1130 = vmul.f32 %v1124, 1.442695
        %v1131 = vpow.pop %v1130
        %v1132 = vmul.f32 %v1125, 1.442695
        %v1133 = vpow.pop %v1132
        %v1134 = vsel %vm918, %v1127, 0.0
        %1135 = vadd.xlane.f32.xlu0 %v1134
        %v1136 = vpop.xlane.xlu0 %1135
        %v1137 = vsel %vm918, %v1129, 0.0
        %1138 = vadd.xlane.f32.xlu0 %v1137
        %v1139 = vpop.xlane.xlu0 %1138
        %v1140 = vsel %vm918, %v1131, 0.0
        %1141 = vadd.xlane.f32.xlu0 %v1140
        %v1142 = vpop.xlane.xlu0 %1141
        %v1143 = vsel %vm918, %v1133, 0.0
        %1144 = vadd.xlane.f32.xlu0 %v1143
        %v1145 = vpop.xlane.xlu0 %1144
        %v1146 = vrcp.pop %v1136
        %v1147 = vrcp.pop %v1139
        %v1148 = vrcp.pop %v1142
        %v1149 = vrcp.pop %v1145
        %v1150 = vmul.f32 %v1127, %v1146
        %v1151 = vmul.f32 %v1129, %v1147
        %v1152 = vmul.f32 %v1131, %v1148
        %v1153 = vmul.f32 %v1133, %v1149
        %v1154 = vpack.c.bf16 %v1150, %v1150
        %v1155 = vpack.c.bf16 %v1151, %v1151
        %v1156 = vpack.c.bf16 %v1152, %v1152
        %v1157 = vpack.c.bf16 %v1153, %v1153
        %1158 = vrot.lane.b32.xlu0 %v815, 64
        %v1159 = vpop.permute.xlu0 %1158
        %v1161 = vsel %vm918, %v1154, 0
        %v1164 = vsel %vm922, %v1159, 0
        %1166 = vmatprep.subr.bf16.mxu0 0
        %1167 = vmatpush1.bf16.msra.mxu0 0
        %1168 = vmatprep.subr.bf16.mxu0 0
        %1169 = vmatpush1.bf16.msra.mxu0 0
        %1170 = vmatprep.subr.bf16.mxu0 0
        %1171 = vmatpush1.bf16.msra.mxu0 0
        %1172 = vmatprep.subr.bf16.mxu0 0
        %1173 = vmatpush1.bf16.msra.mxu0 0
        %1174 = vmatprep.subr.bf16.mxu0 0
        %1175 = vmatpush1.bf16.msra.mxu0 0
        %1176 = vmatprep.subr.bf16.mxu0 0
        %1177 = vmatpush1.bf16.msra.mxu0 0
        %1178 = vmatprep.subr.bf16.mxu0 0
        %1179 = vmatpush1.bf16.msra.mxu0 0
        %1180 = vmatprep.subr.bf16.mxu0 0
        %1181 = vmatpush1.bf16.msra.mxu0 %v1164
        %1182 = vmatprep.subr.bf16.mxu0 0
        %1183 = vmatpush2.bf16.msra.mxu0 0
        %1184 = vmatprep.subr.bf16.mxu0 0
        %1185 = vmatpush2.bf16.msra.mxu0 0
        %1186 = vmatprep.subr.bf16.mxu0 0
        %1187 = vmatpush2.bf16.msra.mxu0 0
        %1188 = vmatprep.subr.bf16.mxu0 0
        %1189 = vmatpush2.bf16.msra.mxu0 0
        %1190 = vmatprep.subr.bf16.mxu0 0
        %1191 = vmatpush2.bf16.msra.mxu0 0
        %1192 = vmatprep.subr.bf16.mxu0 0
        %1193 = vmatpush2.bf16.msra.mxu0 0
        %1194 = vmatprep.subr.bf16.mxu0 0
        %1195 = vmatpush2.bf16.msra.mxu0 0
        %1196 = vmatprep.subr.bf16.mxu0 0
        %1197 = vmatpush2.bf16.msra.mxu0 0
        %1198 = vmatprep.mubr.bf16.mxu0 0
        %1199 = vmatmul.mubr.bf16.gmra.mxu0 %v1161
        %v1200 = vpop.f32.mrf.mxu0
        %v1201 = vadd.f32 0.0, %v1200
        %v1202 = vpop.f32.mrf.mxu0
        %v1203 = vpop.f32.mrf.mxu0
        %v1204 = vpop.f32.mrf.mxu0
        %1205 = vdwg.mxu0
        %1206 = vrot.lane.b32.xlu0 %v837, 64
        %v1207 = vpop.permute.xlu0 %1206
        %v1209 = vsel %vm918, %v1155, 0
        %v1212 = vsel %vm922, %v1207, 0
        %1214 = vmatprep.subr.bf16.mxu0 0
        %1215 = vmatpush1.bf16.msra.mxu0 0
        %1216 = vmatprep.subr.bf16.mxu0 0
        %1217 = vmatpush1.bf16.msra.mxu0 0
        %1218 = vmatprep.subr.bf16.mxu0 0
        %1219 = vmatpush1.bf16.msra.mxu0 0
        %1220 = vmatprep.subr.bf16.mxu0 0
        %1221 = vmatpush1.bf16.msra.mxu0 0
        %1222 = vmatprep.subr.bf16.mxu0 0
        %1223 = vmatpush1.bf16.msra.mxu0 0
        %1224 = vmatprep.subr.bf16.mxu0 0
        %1225 = vmatpush1.bf16.msra.mxu0 0
        %1226 = vmatprep.subr.bf16.mxu0 0
        %1227 = vmatpush1.bf16.msra.mxu0 0
        %1228 = vmatprep.subr.bf16.mxu0 0
        %1229 = vmatpush1.bf16.msra.mxu0 %v1212
        %1230 = vmatprep.subr.bf16.mxu0 0
        %1231 = vmatpush2.bf16.msra.mxu0 0
        %1232 = vmatprep.subr.bf16.mxu0 0
        %1233 = vmatpush2.bf16.msra.mxu0 0
        %1234 = vmatprep.subr.bf16.mxu0 0
        %1235 = vmatpush2.bf16.msra.mxu0 0
        %1236 = vmatprep.subr.bf16.mxu0 0
        %1237 = vmatpush2.bf16.msra.mxu0 0
        %1238 = vmatprep.subr.bf16.mxu0 0
        %1239 = vmatpush2.bf16.msra.mxu0 0
        %1240 = vmatprep.subr.bf16.mxu0 0
        %1241 = vmatpush2.bf16.msra.mxu0 0
        %1242 = vmatprep.subr.bf16.mxu0 0
        %1243 = vmatpush2.bf16.msra.mxu0 0
        %1244 = vmatprep.subr.bf16.mxu0 0
        %1245 = vmatpush2.bf16.msra.mxu0 0
        %1246 = vmatprep.mubr.bf16.mxu0 0
        %1247 = vmatmul.mubr.bf16.gmra.mxu0 %v1209
        %v1248 = vpop.f32.mrf.mxu0
        %v1249 = vadd.f32 0.0, %v1248
        %v1250 = vpop.f32.mrf.mxu0
        %v1251 = vpop.f32.mrf.mxu0
        %v1252 = vpop.f32.mrf.mxu0
        %1253 = vdwg.mxu0
        %1254 = vrot.lane.b32.xlu0 %v839, 64
        %v1255 = vpop.permute.xlu0 %1254
        %v1257 = vsel %vm918, %v1156, 0
        %v1260 = vsel %vm922, %v1255, 0
        %1262 = vmatprep.subr.bf16.mxu0 0
        %1263 = vmatpush1.bf16.msra.mxu0 0
        %1264 = vmatprep.subr.bf16.mxu0 0
        %1265 = vmatpush1.bf16.msra.mxu0 0
        %1266 = vmatprep.subr.bf16.mxu0 0
        %1267 = vmatpush1.bf16.msra.mxu0 0
        %1268 = vmatprep.subr.bf16.mxu0 0
        %1269 = vmatpush1.bf16.msra.mxu0 0
        %1270 = vmatprep.subr.bf16.mxu0 0
        %1271 = vmatpush1.bf16.msra.mxu0 0
        %1272 = vmatprep.subr.bf16.mxu0 0
        %1273 = vmatpush1.bf16.msra.mxu0 0
        %1274 = vmatprep.subr.bf16.mxu0 0
        %1275 = vmatpush1.bf16.msra.mxu0 0
        %1276 = vmatprep.subr.bf16.mxu0 0
        %1277 = vmatpush1.bf16.msra.mxu0 %v1260
        %1278 = vmatprep.subr.bf16.mxu0 0
        %1279 = vmatpush2.bf16.msra.mxu0 0
        %1280 = vmatprep.subr.bf16.mxu0 0
        %1281 = vmatpush2.bf16.msra.mxu0 0
        %1282 = vmatprep.subr.bf16.mxu0 0
        %1283 = vmatpush2.bf16.msra.mxu0 0
        %1284 = vmatprep.subr.bf16.mxu0 0
        %1285 = vmatpush2.bf16.msra.mxu0 0
        %1286 = vmatprep.subr.bf16.mxu0 0
        %1287 = vmatpush2.bf16.msra.mxu0 0
        %1288 = vmatprep.subr.bf16.mxu0 0
        %1289 = vmatpush2.bf16.msra.mxu0 0
        %1290 = vmatprep.subr.bf16.mxu0 0
        %1291 = vmatpush2.bf16.msra.mxu0 0
        %1292 = vmatprep.subr.bf16.mxu0 0
        %1293 = vmatpush2.bf16.msra.mxu0 0
        %1294 = vmatprep.mubr.bf16.mxu0 0
        %1295 = vmatmul.mubr.bf16.gmra.mxu0 %v1257
        %v1296 = vpop.f32.mrf.mxu0
        %v1297 = vadd.f32 0.0, %v1296
        %v1298 = vpop.f32.mrf.mxu0
        %v1299 = vpop.f32.mrf.mxu0
        %v1300 = vpop.f32.mrf.mxu0
        %1301 = vdwg.mxu0
        %1302 = vrot.lane.b32.xlu0 %v841, 64
        %v1303 = vpop.permute.xlu0 %1302
        %v1305 = vsel %vm918, %v1157, 0
        %v1308 = vsel %vm922, %v1303, 0
        %1310 = vmatprep.subr.bf16.mxu0 0
        %1311 = vmatpush1.bf16.msra.mxu0 0
        %1312 = vmatprep.subr.bf16.mxu0 0
        %1313 = vmatpush1.bf16.msra.mxu0 0
        %1314 = vmatprep.subr.bf16.mxu0 0
        %1315 = vmatpush1.bf16.msra.mxu0 0
        %1316 = vmatprep.subr.bf16.mxu0 0
        %1317 = vmatpush1.bf16.msra.mxu0 0
        %1318 = vmatprep.subr.bf16.mxu0 0
        %1319 = vmatpush1.bf16.msra.mxu0 0
        %1320 = vmatprep.subr.bf16.mxu0 0
        %1321 = vmatpush1.bf16.msra.mxu0 0
        %1322 = vmatprep.subr.bf16.mxu0 0
        %1323 = vmatpush1.bf16.msra.mxu0 0
        %1324 = vmatprep.subr.bf16.mxu0 0
        %1325 = vmatpush1.bf16.msra.mxu0 %v1308
        %1326 = vmatprep.subr.bf16.mxu0 0
        %1327 = vmatpush2.bf16.msra.mxu0 0
        %1328 = vmatprep.subr.bf16.mxu0 0
        %1329 = vmatpush2.bf16.msra.mxu0 0
        %1330 = vmatprep.subr.bf16.mxu0 0
        %1331 = vmatpush2.bf16.msra.mxu0 0
        %1332 = vmatprep.subr.bf16.mxu0 0
        %1333 = vmatpush2.bf16.msra.mxu0 0
        %1334 = vmatprep.subr.bf16.mxu0 0
        %1335 = vmatpush2.bf16.msra.mxu0 0
        %1336 = vmatprep.subr.bf16.mxu0 0
        %1337 = vmatpush2.bf16.msra.mxu0 0
        %1338 = vmatprep.subr.bf16.mxu0 0
        %1339 = vmatpush2.bf16.msra.mxu0 0
        %1340 = vmatprep.subr.bf16.mxu0 0
        %1341 = vmatpush2.bf16.msra.mxu0 0
        %1342 = vmatprep.mubr.bf16.mxu0 0
        %1343 = vmatmul.mubr.bf16.gmra.mxu0 %v1305
        %v1344 = vpop.f32.mrf.mxu0
        %v1345 = vadd.f32 0.0, %v1344
        %v1346 = vpop.f32.mrf.mxu0
        %v1347 = vpop.f32.mrf.mxu0
        %v1348 = vpop.f32.mrf.mxu0
        %1349 = vdwg.mxu0
        %v1350 = vpack.c.bf16 %v1201, %v1201
        %v1351 = vpack.c.bf16 %v1249, %v1249
        %v1352 = vpack.c.bf16 %v1297, %v1297
        %v1353 = vpack.c.bf16 %v1345, %v1345
        %v1355 = vsel %vm918, %v1350, 0
        %v1358 = vsel %vm922, %v830, 0
        %1360 = vmatprep.subr.bf16.mxu0 0
        %1361 = vmatpush1.bf16.msra.mxu0 0
        %1362 = vmatprep.subr.bf16.mxu0 0
        %1363 = vmatpush1.bf16.msra.mxu0 0
        %1364 = vmatprep.subr.bf16.mxu0 0
        %1365 = vmatpush1.bf16.msra.mxu0 0
        %1366 = vmatprep.subr.bf16.mxu0 0
        %1367 = vmatpush1.bf16.msra.mxu0 0
        %1368 = vmatprep.subr.bf16.mxu0 0
        %1369 = vmatpush1.bf16.msra.mxu0 0
        %1370 = vmatprep.subr.bf16.mxu0 0
        %1371 = vmatpush1.bf16.msra.mxu0 0
        %1372 = vmatprep.subr.bf16.mxu0 0
        %1373 = vmatpush1.bf16.msra.mxu0 0
        %1374 = vmatprep.subr.bf16.mxu0 0
        %1375 = vmatpush1.bf16.msra.mxu0 %v1358
        %1376 = vmatprep.subr.bf16.mxu0 0
        %1377 = vmatpush2.bf16.msra.mxu0 0
        %1378 = vmatprep.subr.bf16.mxu0 0
        %1379 = vmatpush2.bf16.msra.mxu0 0
        %1380 = vmatprep.subr.bf16.mxu0 0
        %1381 = vmatpush2.bf16.msra.mxu0 0
        %1382 = vmatprep.subr.bf16.mxu0 0
        %1383 = vmatpush2.bf16.msra.mxu0 0
        %1384 = vmatprep.subr.bf16.mxu0 0
        %1385 = vmatpush2.bf16.msra.mxu0 0
        %1386 = vmatprep.subr.bf16.mxu0 0
        %1387 = vmatpush2.bf16.msra.mxu0 0
        %1388 = vmatprep.subr.bf16.mxu0 0
        %1389 = vmatpush2.bf16.msra.mxu0 0
        %1390 = vmatprep.subr.bf16.mxu0 0
        %1391 = vmatpush2.bf16.msra.mxu0 0
        %1392 = vmatprep.mubr.bf16.mxu0 0
        %1393 = vmatmul.mubr.bf16.gmra.mxu0 %v1355
        %v1394 = vpop.f32.mrf.mxu0
        %v1395 = vadd.f32 0.0, %v1394
        %v1396 = vpop.f32.mrf.mxu0
        %v1397 = vpop.f32.mrf.mxu0
        %v1398 = vpop.f32.mrf.mxu0
        %1399 = vdwg.mxu0
        %v1401 = vsel %vm918, %v1351, 0
        %v1404 = vsel %vm922, %v831, 0
        %1406 = vmatprep.subr.bf16.mxu0 0
        %1407 = vmatpush1.bf16.msra.mxu0 0
        %1408 = vmatprep.subr.bf16.mxu0 0
        %1409 = vmatpush1.bf16.msra.mxu0 0
        %1410 = vmatprep.subr.bf16.mxu0 0
        %1411 = vmatpush1.bf16.msra.mxu0 0
        %1412 = vmatprep.subr.bf16.mxu0 0
        %1413 = vmatpush1.bf16.msra.mxu0 0
        %1414 = vmatprep.subr.bf16.mxu0 0
        %1415 = vmatpush1.bf16.msra.mxu0 0
        %1416 = vmatprep.subr.bf16.mxu0 0
        %1417 = vmatpush1.bf16.msra.mxu0 0
        %1418 = vmatprep.subr.bf16.mxu0 0
        %1419 = vmatpush1.bf16.msra.mxu0 0
        %1420 = vmatprep.subr.bf16.mxu0 0
        %1421 = vmatpush1.bf16.msra.mxu0 %v1404
        %1422 = vmatprep.subr.bf16.mxu0 0
        %1423 = vmatpush2.bf16.msra.mxu0 0
        %1424 = vmatprep.subr.bf16.mxu0 0
        %1425 = vmatpush2.bf16.msra.mxu0 0
        %1426 = vmatprep.subr.bf16.mxu0 0
        %1427 = vmatpush2.bf16.msra.mxu0 0
        %1428 = vmatprep.subr.bf16.mxu0 0
        %1429 = vmatpush2.bf16.msra.mxu0 0
        %1430 = vmatprep.subr.bf16.mxu0 0
        %1431 = vmatpush2.bf16.msra.mxu0 0
        %1432 = vmatprep.subr.bf16.mxu0 0
        %1433 = vmatpush2.bf16.msra.mxu0 0
        %1434 = vmatprep.subr.bf16.mxu0 0
        %1435 = vmatpush2.bf16.msra.mxu0 0
        %1436 = vmatprep.subr.bf16.mxu0 0
        %1437 = vmatpush2.bf16.msra.mxu0 0
        %1438 = vmatprep.mubr.bf16.mxu0 0
        %1439 = vmatmul.mubr.bf16.gmra.mxu0 %v1401
        %v1440 = vpop.f32.mrf.mxu0
        %v1441 = vadd.f32 0.0, %v1440
        %v1442 = vpop.f32.mrf.mxu0
        %v1443 = vpop.f32.mrf.mxu0
        %v1444 = vpop.f32.mrf.mxu0
        %1445 = vdwg.mxu0
        %v1447 = vsel %vm918, %v1352, 0
        %v1450 = vsel %vm922, %v832, 0
        %1452 = vmatprep.subr.bf16.mxu0 0
        %1453 = vmatpush1.bf16.msra.mxu0 0
        %1454 = vmatprep.subr.bf16.mxu0 0
        %1455 = vmatpush1.bf16.msra.mxu0 0
        %1456 = vmatprep.subr.bf16.mxu0 0
        %1457 = vmatpush1.bf16.msra.mxu0 0
        %1458 = vmatprep.subr.bf16.mxu0 0
        %1459 = vmatpush1.bf16.msra.mxu0 0
        %1460 = vmatprep.subr.bf16.mxu0 0
        %1461 = vmatpush1.bf16.msra.mxu0 0
        %1462 = vmatprep.subr.bf16.mxu0 0
        %1463 = vmatpush1.bf16.msra.mxu0 0
        %1464 = vmatprep.subr.bf16.mxu0 0
        %1465 = vmatpush1.bf16.msra.mxu0 0
        %1466 = vmatprep.subr.bf16.mxu0 0
        %1467 = vmatpush1.bf16.msra.mxu0 %v1450
        %1468 = vmatprep.subr.bf16.mxu0 0
        %1469 = vmatpush2.bf16.msra.mxu0 0
        %1470 = vmatprep.subr.bf16.mxu0 0
        %1471 = vmatpush2.bf16.msra.mxu0 0
        %1472 = vmatprep.subr.bf16.mxu0 0
        %1473 = vmatpush2.bf16.msra.mxu0 0
        %1474 = vmatprep.subr.bf16.mxu0 0
        %1475 = vmatpush2.bf16.msra.mxu0 0
        %1476 = vmatprep.subr.bf16.mxu0 0
        %1477 = vmatpush2.bf16.msra.mxu0 0
        %1478 = vmatprep.subr.bf16.mxu0 0
        %1479 = vmatpush2.bf16.msra.mxu0 0
        %1480 = vmatprep.subr.bf16.mxu0 0
        %1481 = vmatpush2.bf16.msra.mxu0 0
        %1482 = vmatprep.subr.bf16.mxu0 0
        %1483 = vmatpush2.bf16.msra.mxu0 0
        %1484 = vmatprep.mubr.bf16.mxu0 0
        %1485 = vmatmul.mubr.bf16.gmra.mxu0 %v1447
        %v1486 = vpop.f32.mrf.mxu0
        %v1487 = vadd.f32 0.0, %v1486
        %v1488 = vpop.f32.mrf.mxu0
        %v1489 = vpop.f32.mrf.mxu0
        %v1490 = vpop.f32.mrf.mxu0
        %1491 = vdwg.mxu0
        %v1493 = vsel %vm918, %v1353, 0
        %v1496 = vsel %vm922, %v833, 0
        %1498 = vmatprep.subr.bf16.mxu0 0
        %1499 = vmatpush1.bf16.msra.mxu0 0
        %1500 = vmatprep.subr.bf16.mxu0 0
        %1501 = vmatpush1.bf16.msra.mxu0 0
        %1502 = vmatprep.subr.bf16.mxu0 0
        %1503 = vmatpush1.bf16.msra.mxu0 0
        %1504 = vmatprep.subr.bf16.mxu0 0
        %1505 = vmatpush1.bf16.msra.mxu0 0
        %1506 = vmatprep.subr.bf16.mxu0 0
        %1507 = vmatpush1.bf16.msra.mxu0 0
        %1508 = vmatprep.subr.bf16.mxu0 0
        %1509 = vmatpush1.bf16.msra.mxu0 0
        %1510 = vmatprep.subr.bf16.mxu0 0
        %1511 = vmatpush1.bf16.msra.mxu0 0
        %1512 = vmatprep.subr.bf16.mxu0 0
        %1513 = vmatpush1.bf16.msra.mxu0 %v1496
        %1514 = vmatprep.subr.bf16.mxu0 0
        %1515 = vmatpush2.bf16.msra.mxu0 0
        %1516 = vmatprep.subr.bf16.mxu0 0
        %1517 = vmatpush2.bf16.msra.mxu0 0
        %1518 = vmatprep.subr.bf16.mxu0 0
        %1519 = vmatpush2.bf16.msra.mxu0 0
        %1520 = vmatprep.subr.bf16.mxu0 0
        %1521 = vmatpush2.bf16.msra.mxu0 0
        %1522 = vmatprep.subr.bf16.mxu0 0
        %1523 = vmatpush2.bf16.msra.mxu0 0
        %1524 = vmatprep.subr.bf16.mxu0 0
        %1525 = vmatpush2.bf16.msra.mxu0 0
        %1526 = vmatprep.subr.bf16.mxu0 0
        %1527 = vmatpush2.bf16.msra.mxu0 0
        %1528 = vmatprep.subr.bf16.mxu0 0
        %1529 = vmatpush2.bf16.msra.mxu0 0
        %1530 = vmatprep.mubr.bf16.mxu0 0
        %1531 = vmatmul.mubr.bf16.gmra.mxu0 %v1493
        %v1532 = vpop.f32.mrf.mxu0
        %v1533 = vadd.f32 0.0, %v1532
        %v1534 = vpop.f32.mrf.mxu0
        %v1535 = vpop.f32.mrf.mxu0
        %v1536 = vpop.f32.mrf.mxu0
        %1537 = vdwg.mxu0
        %v1538 = vsel %vm771, %v1395, 0.0
        %v1539 = vsel %vm771, %v1441, 0.0
        %v1540 = vadd.f32 %v1538, %v1539
        %v1541 = vsel %vm771, %v1487, 0.0
        %v1542 = vadd.f32 %v1540, %v1541
        %v1543 = vsel %vm771, %v1533, 0.0
        %v1544 = vadd.f32 %v1542, %v1543
        %v1546 = vlaneseq
        %v1547 = vshrl.u32 %v1546, 7
        %v1548 = vsub.s32 0, %v1547
        %v1549 = vrot.slane %v834, %v1548
        %v1551 = vadd.f32 %v1544, %v1549
        %v1552 = vadd.f32 %v1551, %v744
        %v1553 = vld [vmem:[#allocation14] sm:$0x1]
        %v1554 = vld [vmem:[#allocation16] sm:$0x1]
        %v1555 = vsel %vm771, %v1552, 0.0
        %1556 = vadd.xlane.f32.xlu0 %v1555
        %v1557 = vpop.xlane.xlu0 %1556
        %v1558 = vrcp.pop 32.0
        %v1559 = vmul.f32 %v1557, %v1558
        %v1560 = vsub.f32 %v1552, %v1559
        %v1561 = vmul.f32 %v1560, %v1560
        %v1562 = vsel %vm771, %v1561, 0.0
        %1563 = vadd.xlane.f32.xlu0 %v1562
        %v1564 = vpop.xlane.xlu0 %1563
        %v1565 = vmul.f32 %v1564, %v1558
        %v1566 = vadd.f32 %v1565, 1e-05
        %v1567 = vrsqrt.pop %v1566
        %v1568 = vmul.f32 %v1560, %v1567
        %v1570 = vlaneseq
        %v1571 = vshrl.u32 %v1570, 7
        %v1572 = vsub.s32 0, %v1571
        %v1573 = vrot.slane %v1553, %v1572
        %v1575 = vmul.f32 %v1568, %v1573
        %v1577 = vlaneseq
        %v1578 = vshrl.u32 %v1577, 7
        %v1579 = vsub.s32 0, %v1578
        %v1580 = vrot.slane %v1554, %v1579
        %v1582 = vadd.f32 %v1575, %v1580
        %v1583 = vpack.c.bf16 %v1551, %v1551
        %v1584 = vld [vmem:[%s9] sm:$0xf]
        %v1585 = vld [vmem:[%s9 + $0x4] sm:$0xf]
        %v1586 = vld [vmem:[%s9 + $0x8] sm:$0xf]
        %v1587 = vld [vmem:[%s9 + $0xc] sm:$0xf]
        %v1588 = vld [vmem:[%s10] sm:$0x1]
        %v1590 = vlaneseq
        %v1591 = vshrl.u32 %v1590, 7
        %v1592 = vsub.s32 0, %v1591
        %v1593 = vrot.slane %v1588, %v1592
        %v1599 = vunpack.c.l.b16 %v1584
        %v1600 = vunpack.c.l.b16 %v1585
        %v1601 = vunpack.c.l.b16 %v1586
        %v1602 = vunpack.c.l.b16 %v1587
        %v1603 = vpack.c.b16 %v1600, %v1599
        %v1604 = vpack.c.b16 %v1602, %v1601
        %v1608 = vsel %vm771, %v1583, 0
        %1610 = vmatprep.subr.bf16.mxu0 0
        %1611 = vmatpush1.bf16.msra.mxu0 0
        %1612 = vmatprep.subr.bf16.mxu0 0
        %1613 = vmatpush1.bf16.msra.mxu0 0
        %1614 = vmatprep.subr.bf16.mxu0 0
        %1615 = vmatpush1.bf16.msra.mxu0 0
        %1616 = vmatprep.subr.bf16.mxu0 0
        %1617 = vmatpush1.bf16.msra.mxu0 0
        %1618 = vmatprep.subr.bf16.mxu0 0
        %1619 = vmatpush1.bf16.msra.mxu0 0
        %1620 = vmatprep.subr.bf16.mxu0 0
        %1621 = vmatpush1.bf16.msra.mxu0 0
        %1622 = vmatprep.subr.bf16.mxu0 0
        %1623 = vmatpush1.bf16.msra.mxu0 %v1604
        %1624 = vmatprep.subr.bf16.mxu0 0
        %1625 = vmatpush1.bf16.msra.mxu0 %v1603
        %1626 = vmatprep.subr.bf16.mxu0 0
        %1627 = vmatpush2.bf16.msra.mxu0 0
        %1628 = vmatprep.subr.bf16.mxu0 0
        %1629 = vmatpush2.bf16.msra.mxu0 0
        %1630 = vmatprep.subr.bf16.mxu0 0
        %1631 = vmatpush2.bf16.msra.mxu0 0
        %1632 = vmatprep.subr.bf16.mxu0 0
        %1633 = vmatpush2.bf16.msra.mxu0 0
        %1634 = vmatprep.subr.bf16.mxu0 0
        %1635 = vmatpush2.bf16.msra.mxu0 0
        %1636 = vmatprep.subr.bf16.mxu0 0
        %1637 = vmatpush2.bf16.msra.mxu0 0
        %1638 = vmatprep.subr.bf16.mxu0 0
        %1639 = vmatpush2.bf16.msra.mxu0 0
        %1640 = vmatprep.subr.bf16.mxu0 0
        %1641 = vmatpush2.bf16.msra.mxu0 0
        %1642 = vmatprep.mubr.bf16.mxu0 0
        %1643 = vmatmul.mubr.bf16.gmra.mxu0 %v1608
        %v1644 = vpop.f32.mrf.mxu0
        %v1645 = vadd.f32 %v1593, %v1644
        %v1646 = vpop.f32.mrf.mxu0
        %v1647 = vpop.f32.mrf.mxu0
        %v1648 = vpop.f32.mrf.mxu0
        %1649 = vdwg.mxu0
        %v1650 = vpack.c.bf16 %v746, %v745
        %v1651 = vld [vmem:[#allocation17] sm:$0xf]
        %v1652 = vld [vmem:[#allocation17 + $0x4] sm:$0xf]
        %v1653 = vld [vmem:[#allocation17 + $0x8] sm:$0xf]
        %v1654 = vld [vmem:[#allocation17 + $0xc] sm:$0xf]
        %v1655 = vld [vmem:[#allocation17 + $0x10] sm:$0xf]
        %v1656 = vld [vmem:[#allocation17 + $0x14] sm:$0xf]
        %v1657 = vld [vmem:[%s12] sm:$0x1]
        %v1659 = vlaneseq
        %v1660 = vshrl.u32 %v1659, 7
        %v1661 = vsub.s32 0, %v1660
        %v1662 = vrot.slane %v1657, %v1661
        %v1670 = vunpack.c.l.b16 %v1651
        %v1671 = vunpack.c.l.b16 %v1652
        %v1672 = vunpack.c.l.b16 %v1653
        %v1673 = vunpack.c.l.b16 %v1654
        %v1674 = vunpack.c.l.b16 %v1655
        %v1675 = vunpack.c.l.b16 %v1656
        %v1676 = vpack.c.b16 %v1671, %v1670
        %v1677 = vpack.c.b16 %v1673, %v1672
        %v1678 = vpack.c.b16 %v1675, %v1674
        %vm1682 = vcmask 392192
        %v1684 = vsel %vm1682, %v1650, 0
        %1686 = vmatprep.subr.bf16.mxu0 0
        %1687 = vmatpush1.bf16.msra.mxu0 0
        %1688 = vmatprep.subr.bf16.mxu0 0
        %1689 = vmatpush1.bf16.msra.mxu0 0
        %1690 = vmatprep.subr.bf16.mxu0 0
        %1691 = vmatpush1.bf16.msra.mxu0 0
        %1692 = vmatprep.subr.bf16.mxu0 0
        %1693 = vmatpush1.bf16.msra.mxu0 0
        %1694 = vmatprep.subr.bf16.mxu0 0
        %1695 = vmatpush1.bf16.msra.mxu0 0
        %1696 = vmatprep.subr.bf16.mxu0 0
        %1697 = vmatpush1.bf16.msra.mxu0 %v1678
        %1698 = vmatprep.subr.bf16.mxu0 0
        %1699 = vmatpush1.bf16.msra.mxu0 %v1677
        %1700 = vmatprep.subr.bf16.mxu0 0
        %1701 = vmatpush1.bf16.msra.mxu0 %v1676
        %1702 = vmatprep.subr.bf16.mxu0 0
        %1703 = vmatpush2.bf16.msra.mxu0 0
        %1704 = vmatprep.subr.bf16.mxu0 0
        %1705 = vmatpush2.bf16.msra.mxu0 0
        %1706 = vmatprep.subr.bf16.mxu0 0
        %1707 = vmatpush2.bf16.msra.mxu0 0
        %1708 = vmatprep.subr.bf16.mxu0 0
        %1709 = vmatpush2.bf16.msra.mxu0 0
        %1710 = vmatprep.subr.bf16.mxu0 0
        %1711 = vmatpush2.bf16.msra.mxu0 0
        %1712 = vmatprep.subr.bf16.mxu0 0
        %1713 = vmatpush2.bf16.msra.mxu0 0
        %1714 = vmatprep.subr.bf16.mxu0 0
        %1715 = vmatpush2.bf16.msra.mxu0 0
        %1716 = vmatprep.subr.bf16.mxu0 0
        %1717 = vmatpush2.bf16.msra.mxu0 0
        %1718 = vmatprep.mubr.bf16.mxu0 0
        %1719 = vmatmul.mubr.bf16.gmra.mxu0 %v1684
        %v1720 = vpop.f32.mrf.mxu0
        %v1721 = vadd.f32 %v1662, %v1720
        %v1722 = vpop.f32.mrf.mxu0
        %v1723 = vpop.f32.mrf.mxu0
        %v1724 = vadd.f32 %v1662, %v1723
        %v1725 = vpop.f32.mrf.mxu0
        %1726 = vdwg.mxu0
        %v1727 = vpack.c.bf16 %v1724, %v1721
        %v1728 = vpack.c.bf16 %v1645, %v1645
        %v1729 = vld [vmem:[#allocation19] sm:$0xf]
        %v1730 = vld [vmem:[#allocation19 + $0x4] sm:$0xf]
        %v1731 = vld [vmem:[#allocation19 + $0x8] sm:$0xf]
        %v1732 = vld [vmem:[#allocation19 + $0xc] sm:$0xf]
        %v1733 = vld [vmem:[%s14] sm:$0x1]
        %1735 = vrot.lane.b32.xlu0 %v1728, 120
        %v1736 = vpop.permute.xlu0 %1735
        %1737 = vrot.lane.b32.xlu0 %v1728, 112
        %v1738 = vpop.permute.xlu0 %1737
        %1739 = vrot.lane.b32.xlu0 %v1728, 104
        %v1740 = vpop.permute.xlu0 %1739
        %1742 = vrot.lane.b32.xlu0 %v1727, 120
        %v1743 = vpop.permute.xlu0 %1742
        %1745 = vrot.lane.b32.xlu0 %v1727, 112
        %v1746 = vpop.permute.xlu0 %1745
        %1748 = vrot.lane.b32.xlu0 %v1727, 104
        %v1749 = vpop.permute.xlu0 %1748
        %1751 = vxpose.xlu0.c.b16.start [1/8] %v1727, 128
        %1752 = vxpose.xlu0.c.b16.cont [2/8] 0, 128
        %1753 = vxpose.xlu0.c.b16.cont [3/8] 0, 128
        %1754 = vxpose.xlu0.c.b16.cont [4/8] 0, 128
        %1755 = vxpose.xlu0.c.b16.cont [5/8] 0, 128
        %1756 = vxpose.xlu0.c.b16.cont [6/8] 0, 128
        %1757 = vxpose.xlu0.c.b16.cont [7/8] 0, 128
        %1758 = vxpose.xlu0.c.b16.end [8/8] 0, 128
        %v1759 = vpop.trf.xlu0
        %v1760 = vpop.trf.xlu0
        %v1761 = vpop.trf.xlu0
        %v1762 = vpop.trf.xlu0
        %v1763 = vpop.trf.xlu0
        %v1764 = vpop.trf.xlu0
        %v1765 = vpop.trf.xlu0
        %v1766 = vpop.trf.xlu0
        %1767 = vxpose.xlu0.c.b16.start [1/8] %v1743, 128
        %1768 = vxpose.xlu0.c.b16.cont [2/8] 0, 128
        %1769 = vxpose.xlu0.c.b16.cont [3/8] 0, 128
        %1770 = vxpose.xlu0.c.b16.cont [4/8] 0, 128
        %1771 = vxpose.xlu0.c.b16.cont [5/8] 0, 128
        %1772 = vxpose.xlu0.c.b16.cont [6/8] 0, 128
        %1773 = vxpose.xlu0.c.b16.cont [7/8] 0, 128
        %1774 = vxpose.xlu0.c.b16.end [8/8] 0, 128
        %v1775 = vpop.trf.xlu0
        %v1776 = vpop.trf.xlu0
        %v1777 = vpop.trf.xlu0
        %v1778 = vpop.trf.xlu0
        %v1779 = vpop.trf.xlu0
        %v1780 = vpop.trf.xlu0
        %v1781 = vpop.trf.xlu0
        %v1782 = vpop.trf.xlu0
        %1783 = vxpose.xlu0.c.b16.start [1/8] %v1746, 128
        %1784 = vxpose.xlu0.c.b16.cont [2/8] 0, 128
        %1785 = vxpose.xlu0.c.b16.cont [3/8] 0, 128
        %1786 = vxpose.xlu0.c.b16.cont [4/8] 0, 128
        %1787 = vxpose.xlu0.c.b16.cont [5/8] 0, 128
        %1788 = vxpose.xlu0.c.b16.cont [6/8] 0, 128
        %1789 = vxpose.xlu0.c.b16.cont [7/8] 0, 128
        %1790 = vxpose.xlu0.c.b16.end [8/8] 0, 128
        %v1791 = vpop.trf.xlu0
        %v1792 = vpop.trf.xlu0
        %v1793 = vpop.trf.xlu0
        %v1794 = vpop.trf.xlu0
        %v1795 = vpop.trf.xlu0
        %v1796 = vpop.trf.xlu0
        %v1797 = vpop.trf.xlu0
        %v1798 = vpop.trf.xlu0
        %1799 = vxpose.xlu0.c.b16.start [1/8] %v1749, 128
        %1800 = vxpose.xlu0.c.b16.cont [2/8] 0, 128
        %1801 = vxpose.xlu0.c.b16.cont [3/8] 0, 128
        %1802 = vxpose.xlu0.c.b16.cont [4/8] 0, 128
        %1803 = vxpose.xlu0.c.b16.cont [5/8] 0, 128
        %1804 = vxpose.xlu0.c.b16.cont [6/8] 0, 128
        %1805 = vxpose.xlu0.c.b16.cont [7/8] 0, 128
        %1806 = vxpose.xlu0.c.b16.end [8/8] 0, 128
        %v1807 = vpop.trf.xlu0
        %v1808 = vpop.trf.xlu0
        %v1809 = vpop.trf.xlu0
        %v1810 = vpop.trf.xlu0
        %v1811 = vpop.trf.xlu0
        %v1812 = vpop.trf.xlu0
        %v1813 = vpop.trf.xlu0
        %v1814 = vpop.trf.xlu0
        %v1816 = vsel %vm918, %v1728, 0
        %v1819 = vsel %vm922, %v1759, 0
        %1821 = vmatprep.subr.bf16.mxu0 0
        %1822 = vmatpush1.bf16.msra.mxu0 0
        %1823 = vmatprep.subr.bf16.mxu0 0
        %1824 = vmatpush1.bf16.msra.mxu0 0
        %1825 = vmatprep.subr.bf16.mxu0 0
        %1826 = vmatpush1.bf16.msra.mxu0 0
        %1827 = vmatprep.subr.bf16.mxu0 0
        %1828 = vmatpush1.bf16.msra.mxu0 0
        %1829 = vmatprep.subr.bf16.mxu0 0
        %1830 = vmatpush1.bf16.msra.mxu0 0
        %1831 = vmatprep.subr.bf16.mxu0 0
        %1832 = vmatpush1.bf16.msra.mxu0 0
        %1833 = vmatprep.subr.bf16.mxu0 0
        %1834 = vmatpush1.bf16.msra.mxu0 0
        %1835 = vmatprep.subr.bf16.mxu0 0
        %1836 = vmatpush1.bf16.msra.mxu0 %v1819
        %1837 = vmatprep.subr.bf16.mxu0 0
        %1838 = vmatpush2.bf16.msra.mxu0 0
        %1839 = vmatprep.subr.bf16.mxu0 0
        %1840 = vmatpush2.bf16.msra.mxu0 0
        %1841 = vmatprep.subr.bf16.mxu0 0
        %1842 = vmatpush2.bf16.msra.mxu0 0
        %1843 = vmatprep.subr.bf16.mxu0 0
        %1844 = vmatpush2.bf16.msra.mxu0 0
        %1845 = vmatprep.subr.bf16.mxu0 0
        %1846 = vmatpush2.bf16.msra.mxu0 0
        %1847 = vmatprep.subr.bf16.mxu0 0
        %1848 = vmatpush2.bf16.msra.mxu0 0
        %1849 = vmatprep.subr.bf16.mxu0 0
        %1850 = vmatpush2.bf16.msra.mxu0 0
        %1851 = vmatprep.subr.bf16.mxu0 0
        %1852 = vmatpush2.bf16.msra.mxu0 0
        %1853 = vmatprep.mubr.bf16.mxu0 0
        %1854 = vmatmul.mubr.bf16.gmra.mxu0 %v1816
        %v1855 = vpop.f32.mrf.mxu0
        %v1856 = vadd.f32 0.0, %v1855
        %v1857 = vpop.f32.mrf.mxu0
        %v1858 = vpop.f32.mrf.mxu0
        %v1859 = vpop.f32.mrf.mxu0
        %1860 = vdwg.mxu0
        %v1862 = vsel %vm918, %v1736, 0
        %v1865 = vsel %vm922, %v1775, 0
        %1867 = vmatprep.subr.bf16.mxu0 0
        %1868 = vmatpush1.bf16.msra.mxu0 0
        %1869 = vmatprep.subr.bf16.mxu0 0
        %1870 = vmatpush1.bf16.msra.mxu0 0
        %1871 = vmatprep.subr.bf16.mxu0 0
        %1872 = vmatpush1.bf16.msra.mxu0 0
        %1873 = vmatprep.subr.bf16.mxu0 0
        %1874 = vmatpush1.bf16.msra.mxu0 0
        %1875 = vmatprep.subr.bf16.mxu0 0
        %1876 = vmatpush1.bf16.msra.mxu0 0
        %1877 = vmatprep.subr.bf16.mxu0 0
        %1878 = vmatpush1.bf16.msra.mxu0 0
        %1879 = vmatprep.subr.bf16.mxu0 0
        %1880 = vmatpush1.bf16.msra.mxu0 0
        %1881 = vmatprep.subr.bf16.mxu0 0
        %1882 = vmatpush1.bf16.msra.mxu0 %v1865
        %1883 = vmatprep.subr.bf16.mxu0 0
        %1884 = vmatpush2.bf16.msra.mxu0 0
        %1885 = vmatprep.subr.bf16.mxu0 0
        %1886 = vmatpush2.bf16.msra.mxu0 0
        %1887 = vmatprep.subr.bf16.mxu0 0
        %1888 = vmatpush2.bf16.msra.mxu0 0
        %1889 = vmatprep.subr.bf16.mxu0 0
        %1890 = vmatpush2.bf16.msra.mxu0 0
        %1891 = vmatprep.subr.bf16.mxu0 0
        %1892 = vmatpush2.bf16.msra.mxu0 0
        %1893 = vmatprep.subr.bf16.mxu0 0
        %1894 = vmatpush2.bf16.msra.mxu0 0
        %1895 = vmatprep.subr.bf16.mxu0 0
        %1896 = vmatpush2.bf16.msra.mxu0 0
        %1897 = vmatprep.subr.bf16.mxu0 0
        %1898 = vmatpush2.bf16.msra.mxu0 0
        %1899 = vmatprep.mubr.bf16.mxu0 0
        %1900 = vmatmul.mubr.bf16.gmra.mxu0 %v1862
        %v1901 = vpop.f32.mrf.mxu0
        %v1902 = vadd.f32 0.0, %v1901
        %v1903 = vpop.f32.mrf.mxu0
        %v1904 = vpop.f32.mrf.mxu0
        %v1905 = vpop.f32.mrf.mxu0
        %1906 = vdwg.mxu0
        %v1908 = vsel %vm918, %v1738, 0
        %v1911 = vsel %vm922, %v1791, 0
        %1913 = vmatprep.subr.bf16.mxu0 0
        %1914 = vmatpush1.bf16.msra.mxu0 0
        %1915 = vmatprep.subr.bf16.mxu0 0
        %1916 = vmatpush1.bf16.msra.mxu0 0
        %1917 = vmatprep.subr.bf16.mxu0 0
        %1918 = vmatpush1.bf16.msra.mxu0 0
        %1919 = vmatprep.subr.bf16.mxu0 0
        %1920 = vmatpush1.bf16.msra.mxu0 0
        %1921 = vmatprep.subr.bf16.mxu0 0
        %1922 = vmatpush1.bf16.msra.mxu0 0
        %1923 = vmatprep.subr.bf16.mxu0 0
        %1924 = vmatpush1.bf16.msra.mxu0 0
        %1925 = vmatprep.subr.bf16.mxu0 0
        %1926 = vmatpush1.bf16.msra.mxu0 0
        %1927 = vmatprep.subr.bf16.mxu0 0
        %1928 = vmatpush1.bf16.msra.mxu0 %v1911
        %1929 = vmatprep.subr.bf16.mxu0 0
        %1930 = vmatpush2.bf16.msra.mxu0 0
        %1931 = vmatprep.subr.bf16.mxu0 0
        %1932 = vmatpush2.bf16.msra.mxu0 0
        %1933 = vmatprep.subr.bf16.mxu0 0
        %1934 = vmatpush2.bf16.msra.mxu0 0
        %1935 = vmatprep.subr.bf16.mxu0 0
        %1936 = vmatpush2.bf16.msra.mxu0 0
        %1937 = vmatprep.subr.bf16.mxu0 0
        %1938 = vmatpush2.bf16.msra.mxu0 0
        %1939 = vmatprep.subr.bf16.mxu0 0
        %1940 = vmatpush2.bf16.msra.mxu0 0
        %1941 = vmatprep.subr.bf16.mxu0 0
        %1942 = vmatpush2.bf16.msra.mxu0 0
        %1943 = vmatprep.subr.bf16.mxu0 0
        %1944 = vmatpush2.bf16.msra.mxu0 0
        %1945 = vmatprep.mubr.bf16.mxu0 0
        %1946 = vmatmul.mubr.bf16.gmra.mxu0 %v1908
        %v1947 = vpop.f32.mrf.mxu0
        %v1948 = vadd.f32 0.0, %v1947
        %v1949 = vpop.f32.mrf.mxu0
        %v1950 = vpop.f32.mrf.mxu0
        %v1951 = vpop.f32.mrf.mxu0
        %1952 = vdwg.mxu0
        %v1954 = vsel %vm918, %v1740, 0
        %v1957 = vsel %vm922, %v1807, 0
        %1959 = vmatprep.subr.bf16.mxu0 0
        %1960 = vmatpush1.bf16.msra.mxu0 0
        %1961 = vmatprep.subr.bf16.mxu0 0
        %1962 = vmatpush1.bf16.msra.mxu0 0
        %1963 = vmatprep.subr.bf16.mxu0 0
        %1964 = vmatpush1.bf16.msra.mxu0 0
        %1965 = vmatprep.subr.bf16.mxu0 0
        %1966 = vmatpush1.bf16.msra.mxu0 0
        %1967 = vmatprep.subr.bf16.mxu0 0
        %1968 = vmatpush1.bf16.msra.mxu0 0
        %1969 = vmatprep.subr.bf16.mxu0 0
        %1970 = vmatpush1.bf16.msra.mxu0 0
        %1971 = vmatprep.subr.bf16.mxu0 0
        %1972 = vmatpush1.bf16.msra.mxu0 0
        %1973 = vmatprep.subr.bf16.mxu0 0
        %1974 = vmatpush1.bf16.msra.mxu0 %v1957
        %1975 = vmatprep.subr.bf16.mxu0 0
        %1976 = vmatpush2.bf16.msra.mxu0 0
        %1977 = vmatprep.subr.bf16.mxu0 0
        %1978 = vmatpush2.bf16.msra.mxu0 0
        %1979 = vmatprep.subr.bf16.mxu0 0
        %1980 = vmatpush2.bf16.msra.mxu0 0
        %1981 = vmatprep.subr.bf16.mxu0 0
        %1982 = vmatpush2.bf16.msra.mxu0 0
        %1983 = vmatprep.subr.bf16.mxu0 0
        %1984 = vmatpush2.bf16.msra.mxu0 0
        %1985 = vmatprep.subr.bf16.mxu0 0
        %1986 = vmatpush2.bf16.msra.mxu0 0
        %1987 = vmatprep.subr.bf16.mxu0 0
        %1988 = vmatpush2.bf16.msra.mxu0 0
        %1989 = vmatprep.subr.bf16.mxu0 0
        %1990 = vmatpush2.bf16.msra.mxu0 0
        %1991 = vmatprep.mubr.bf16.mxu0 0
        %1992 = vmatmul.mubr.bf16.gmra.mxu0 %v1954
        %v1993 = vpop.f32.mrf.mxu0
        %v1994 = vadd.f32 0.0, %v1993
        %v1995 = vpop.f32.mrf.mxu0
        %v1996 = vpop.f32.mrf.mxu0
        %v1997 = vpop.f32.mrf.mxu0
        %1998 = vdwg.mxu0
        %vm1999 = vcmask 130048
        %v2000 = vsel %vm1999, %v1856, -inf
        %2001 = vmax.xlane.f32.xlu0 %v2000
        %v2002 = vpop.xlane.xlu0 %2001
        %v2003 = vsel %vm1999, %v1902, -inf
        %2004 = vmax.xlane.f32.xlu0 %v2003
        %v2005 = vpop.xlane.xlu0 %2004
        %v2006 = vsel %vm1999, %v1948, -inf
        %2007 = vmax.xlane.f32.xlu0 %v2006
        %v2008 = vpop.xlane.xlu0 %2007
        %v2009 = vsel %vm1999, %v1994, -inf
        %2010 = vmax.xlane.f32.xlu0 %v2009
        %v2011 = vpop.xlane.xlu0 %2010
        %v2012 = vsub.f32 %v1856, %v2002
        %v2013 = vsub.f32 %v1902, %v2005
        %v2014 = vsub.f32 %v1948, %v2008
        %v2015 = vsub.f32 %v1994, %v2011
        %v2016 = vmul.f32 %v2012, 1.442695
        %v2017 = vpow.pop %v2016
        %v2018 = vmul.f32 %v2013, 1.442695
        %v2019 = vpow.pop %v2018
        %v2020 = vmul.f32 %v2014, 1.442695
        %v2021 = vpow.pop %v2020
        %v2022 = vmul.f32 %v2015, 1.442695
        %v2023 = vpow.pop %v2022
        %v2024 = vsel %vm1999, %v2017, 0.0
        %2025 = vadd.xlane.f32.xlu0 %v2024
        %v2026 = vpop.xlane.xlu0 %2025
        %v2027 = vsel %vm1999, %v2019, 0.0
        %2028 = vadd.xlane.f32.xlu0 %v2027
        %v2029 = vpop.xlane.xlu0 %2028
        %v2030 = vsel %vm1999, %v2021, 0.0
        %2031 = vadd.xlane.f32.xlu0 %v2030
        %v2032 = vpop.xlane.xlu0 %2031
        %v2033 = vsel %vm1999, %v2023, 0.0
        %2034 = vadd.xlane.f32.xlu0 %v2033
        %v2035 = vpop.xlane.xlu0 %2034
        %v2036 = vrcp.pop %v2026
        %v2037 = vrcp.pop %v2029
        %v2038 = vrcp.pop %v2032
        %v2039 = vrcp.pop %v2035
        %v2040 = vmul.f32 %v2017, %v2036
        %v2041 = vmul.f32 %v2019, %v2037
        %v2042 = vmul.f32 %v2021, %v2038
        %v2043 = vmul.f32 %v2023, %v2039
        %v2044 = vpack.c.bf16 %v2040, %v2040
        %v2045 = vpack.c.bf16 %v2041, %v2041
        %v2046 = vpack.c.bf16 %v2042, %v2042
        %v2047 = vpack.c.bf16 %v2043, %v2043
        %2048 = vrot.lane.b32.xlu0 %v1727, 96
        %v2049 = vpop.permute.xlu0 %2048
        %v2052 = vsel %vm1999, %v2044, 0
        %2054 = vmatprep.subr.bf16.mxu0 0
        %2055 = vmatpush1.bf16.msra.mxu0 0
        %2056 = vmatprep.subr.bf16.mxu0 0
        %2057 = vmatpush1.bf16.msra.mxu0 0
        %2058 = vmatprep.subr.bf16.mxu0 0
        %2059 = vmatpush1.bf16.msra.mxu0 0
        %2060 = vmatprep.subr.bf16.mxu0 0
        %2061 = vmatpush1.bf16.msra.mxu0 0
        %2062 = vmatprep.subr.bf16.mxu0 0
        %2063 = vmatpush1.bf16.msra.mxu0 0
        %2064 = vmatprep.subr.bf16.mxu0 0
        %2065 = vmatpush1.bf16.msra.mxu0 0
        %2066 = vmatprep.subr.bf16.mxu0 0
        %2067 = vmatpush1.bf16.msra.mxu0 0
        %2068 = vmatprep.subr.bf16.mxu0 0
        %2069 = vmatpush1.bf16.msra.mxu0 %v2049
        %2070 = vmatprep.subr.bf16.mxu0 0
        %2071 = vmatpush2.bf16.msra.mxu0 0
        %2072 = vmatprep.subr.bf16.mxu0 0
        %2073 = vmatpush2.bf16.msra.mxu0 0
        %2074 = vmatprep.subr.bf16.mxu0 0
        %2075 = vmatpush2.bf16.msra.mxu0 0
        %2076 = vmatprep.subr.bf16.mxu0 0
        %2077 = vmatpush2.bf16.msra.mxu0 0
        %2078 = vmatprep.subr.bf16.mxu0 0
        %2079 = vmatpush2.bf16.msra.mxu0 0
        %2080 = vmatprep.subr.bf16.mxu0 0
        %2081 = vmatpush2.bf16.msra.mxu0 0
        %2082 = vmatprep.subr.bf16.mxu0 0
        %2083 = vmatpush2.bf16.msra.mxu0 0
        %2084 = vmatprep.subr.bf16.mxu0 0
        %2085 = vmatpush2.bf16.msra.mxu0 0
        %2086 = vmatprep.mubr.bf16.mxu0 0
        %2087 = vmatmul.mubr.bf16.gmra.mxu0 %v2052
        %v2088 = vpop.f32.mrf.mxu0
        %v2089 = vadd.f32 0.0, %v2088
        %v2090 = vpop.f32.mrf.mxu0
        %v2091 = vpop.f32.mrf.mxu0
        %v2092 = vpop.f32.mrf.mxu0
        %2093 = vdwg.mxu0
        %2094 = vrot.lane.b32.xlu0 %v1743, 96
        %v2095 = vpop.permute.xlu0 %2094
        %v2098 = vsel %vm1999, %v2045, 0
        %2100 = vmatprep.subr.bf16.mxu0 0
        %2101 = vmatpush1.bf16.msra.mxu0 0
        %2102 = vmatprep.subr.bf16.mxu0 0
        %2103 = vmatpush1.bf16.msra.mxu0 0
        %2104 = vmatprep.subr.bf16.mxu0 0
        %2105 = vmatpush1.bf16.msra.mxu0 0
        %2106 = vmatprep.subr.bf16.mxu0 0
        %2107 = vmatpush1.bf16.msra.mxu0 0
        %2108 = vmatprep.subr.bf16.mxu0 0
        %2109 = vmatpush1.bf16.msra.mxu0 0
        %2110 = vmatprep.subr.bf16.mxu0 0
        %2111 = vmatpush1.bf16.msra.mxu0 0
        %2112 = vmatprep.subr.bf16.mxu0 0
        %2113 = vmatpush1.bf16.msra.mxu0 0
        %2114 = vmatprep.subr.bf16.mxu0 0
        %2115 = vmatpush1.bf16.msra.mxu0 %v2095
        %2116 = vmatprep.subr.bf16.mxu0 0
        %2117 = vmatpush2.bf16.msra.mxu0 0
        %2118 = vmatprep.subr.bf16.mxu0 0
        %2119 = vmatpush2.bf16.msra.mxu0 0
        %2120 = vmatprep.subr.bf16.mxu0 0
        %2121 = vmatpush2.bf16.msra.mxu0 0
        %2122 = vmatprep.subr.bf16.mxu0 0
        %2123 = vmatpush2.bf16.msra.mxu0 0
        %2124 = vmatprep.subr.bf16.mxu0 0
        %2125 = vmatpush2.bf16.msra.mxu0 0
        %2126 = vmatprep.subr.bf16.mxu0 0
        %2127 = vmatpush2.bf16.msra.mxu0 0
        %2128 = vmatprep.subr.bf16.mxu0 0
        %2129 = vmatpush2.bf16.msra.mxu0 0
        %2130 = vmatprep.subr.bf16.mxu0 0
        %2131 = vmatpush2.bf16.msra.mxu0 0
        %2132 = vmatprep.mubr.bf16.mxu0 0
        %2133 = vmatmul.mubr.bf16.gmra.mxu0 %v2098
        %v2134 = vpop.f32.mrf.mxu0
        %v2135 = vadd.f32 0.0, %v2134
        %v2136 = vpop.f32.mrf.mxu0
        %v2137 = vpop.f32.mrf.mxu0
        %v2138 = vpop.f32.mrf.mxu0
        %2139 = vdwg.mxu0
        %2140 = vrot.lane.b32.xlu0 %v1746, 96
        %v2141 = vpop.permute.xlu0 %2140
        %v2144 = vsel %vm1999, %v2046, 0
        %2146 = vmatprep.subr.bf16.mxu0 0
        %2147 = vmatpush1.bf16.msra.mxu0 0
        %2148 = vmatprep.subr.bf16.mxu0 0
        %2149 = vmatpush1.bf16.msra.mxu0 0
        %2150 = vmatprep.subr.bf16.mxu0 0
        %2151 = vmatpush1.bf16.msra.mxu0 0
        %2152 = vmatprep.subr.bf16.mxu0 0
        %2153 = vmatpush1.bf16.msra.mxu0 0
        %2154 = vmatprep.subr.bf16.mxu0 0
        %2155 = vmatpush1.bf16.msra.mxu0 0
        %2156 = vmatprep.subr.bf16.mxu0 0
        %2157 = vmatpush1.bf16.msra.mxu0 0
        %2158 = vmatprep.subr.bf16.mxu0 0
        %2159 = vmatpush1.bf16.msra.mxu0 0
        %2160 = vmatprep.subr.bf16.mxu0 0
        %2161 = vmatpush1.bf16.msra.mxu0 %v2141
        %2162 = vmatprep.subr.bf16.mxu0 0
        %2163 = vmatpush2.bf16.msra.mxu0 0
        %2164 = vmatprep.subr.bf16.mxu0 0
        %2165 = vmatpush2.bf16.msra.mxu0 0
        %2166 = vmatprep.subr.bf16.mxu0 0
        %2167 = vmatpush2.bf16.msra.mxu0 0
        %2168 = vmatprep.subr.bf16.mxu0 0
        %2169 = vmatpush2.bf16.msra.mxu0 0
        %2170 = vmatprep.subr.bf16.mxu0 0
        %2171 = vmatpush2.bf16.msra.mxu0 0
        %2172 = vmatprep.subr.bf16.mxu0 0
        %2173 = vmatpush2.bf16.msra.mxu0 0
        %2174 = vmatprep.subr.bf16.mxu0 0
        %2175 = vmatpush2.bf16.msra.mxu0 0
        %2176 = vmatprep.subr.bf16.mxu0 0
        %2177 = vmatpush2.bf16.msra.mxu0 0
        %2178 = vmatprep.mubr.bf16.mxu0 0
        %2179 = vmatmul.mubr.bf16.gmra.mxu0 %v2144
        %v2180 = vpop.f32.mrf.mxu0
        %v2181 = vadd.f32 0.0, %v2180
        %v2182 = vpop.f32.mrf.mxu0
        %v2183 = vpop.f32.mrf.mxu0
        %v2184 = vpop.f32.mrf.mxu0
        %2185 = vdwg.mxu0
        %2186 = vrot.lane.b32.xlu0 %v1749, 96
        %v2187 = vpop.permute.xlu0 %2186
        %v2190 = vsel %vm1999, %v2047, 0
        %2192 = vmatprep.subr.bf16.mxu0 0
        %2193 = vmatpush1.bf16.msra.mxu0 0
        %2194 = vmatprep.subr.bf16.mxu0 0
        %2195 = vmatpush1.bf16.msra.mxu0 0
        %2196 = vmatprep.subr.bf16.mxu0 0
        %2197 = vmatpush1.bf16.msra.mxu0 0
        %2198 = vmatprep.subr.bf16.mxu0 0
        %2199 = vmatpush1.bf16.msra.mxu0 0
        %2200 = vmatprep.subr.bf16.mxu0 0
        %2201 = vmatpush1.bf16.msra.mxu0 0
        %2202 = vmatprep.subr.bf16.mxu0 0
        %2203 = vmatpush1.bf16.msra.mxu0 0
        %2204 = vmatprep.subr.bf16.mxu0 0
        %2205 = vmatpush1.bf16.msra.mxu0 0
        %2206 = vmatprep.subr.bf16.mxu0 0
        %2207 = vmatpush1.bf16.msra.mxu0 %v2187
        %2208 = vmatprep.subr.bf16.mxu0 0
        %2209 = vmatpush2.bf16.msra.mxu0 0
        %2210 = vmatprep.subr.bf16.mxu0 0
        %2211 = vmatpush2.bf16.msra.mxu0 0
        %2212 = vmatprep.subr.bf16.mxu0 0
        %2213 = vmatpush2.bf16.msra.mxu0 0
        %2214 = vmatprep.subr.bf16.mxu0 0
        %2215 = vmatpush2.bf16.msra.mxu0 0
        %2216 = vmatprep.subr.bf16.mxu0 0
        %2217 = vmatpush2.bf16.msra.mxu0 0
        %2218 = vmatprep.subr.bf16.mxu0 0
        %2219 = vmatpush2.bf16.msra.mxu0 0
        %2220 = vmatprep.subr.bf16.mxu0 0
        %2221 = vmatpush2.bf16.msra.mxu0 0
        %2222 = vmatprep.subr.bf16.mxu0 0
        %2223 = vmatpush2.bf16.msra.mxu0 0
        %2224 = vmatprep.mubr.bf16.mxu0 0
        %2225 = vmatmul.mubr.bf16.gmra.mxu0 %v2190
        %v2226 = vpop.f32.mrf.mxu0
        %v2227 = vadd.f32 0.0, %v2226
        %v2228 = vpop.f32.mrf.mxu0
        %v2229 = vpop.f32.mrf.mxu0
        %v2230 = vpop.f32.mrf.mxu0
        %2231 = vdwg.mxu0
        %v2232 = vpack.c.bf16 %v2089, %v2089
        %v2233 = vpack.c.bf16 %v2135, %v2135
        %v2234 = vpack.c.bf16 %v2181, %v2181
        %v2235 = vpack.c.bf16 %v2227, %v2227
        %v2237 = vsel %vm918, %v2232, 0
        %v2240 = vsel %vm922, %v1729, 0
        %2242 = vmatprep.subr.bf16.mxu0 0
        %2243 = vmatpush1.bf16.msra.mxu0 0
        %2244 = vmatprep.subr.bf16.mxu0 0
        %2245 = vmatpush1.bf16.msra.mxu0 0
        %2246 = vmatprep.subr.bf16.mxu0 0
        %2247 = vmatpush1.bf16.msra.mxu0 0
        %2248 = vmatprep.subr.bf16.mxu0 0
        %2249 = vmatpush1.bf16.msra.mxu0 0
        %2250 = vmatprep.subr.bf16.mxu0 0
        %2251 = vmatpush1.bf16.msra.mxu0 0
        %2252 = vmatprep.subr.bf16.mxu0 0
        %2253 = vmatpush1.bf16.msra.mxu0 0
        %2254 = vmatprep.subr.bf16.mxu0 0
        %2255 = vmatpush1.bf16.msra.mxu0 0
        %2256 = vmatprep.subr.bf16.mxu0 0
        %2257 = vmatpush1.bf16.msra.mxu0 %v2240
        %2258 = vmatprep.subr.bf16.mxu0 0
        %2259 = vmatpush2.bf16.msra.mxu0 0
        %2260 = vmatprep.subr.bf16.mxu0 0
        %2261 = vmatpush2.bf16.msra.mxu0 0
        %2262 = vmatprep.subr.bf16.mxu0 0
        %2263 = vmatpush2.bf16.msra.mxu0 0
        %2264 = vmatprep.subr.bf16.mxu0 0
        %2265 = vmatpush2.bf16.msra.mxu0 0
        %2266 = vmatprep.subr.bf16.mxu0 0
        %2267 = vmatpush2.bf16.msra.mxu0 0
        %2268 = vmatprep.subr.bf16.mxu0 0
        %2269 = vmatpush2.bf16.msra.mxu0 0
        %2270 = vmatprep.subr.bf16.mxu0 0
        %2271 = vmatpush2.bf16.msra.mxu0 0
        %2272 = vmatprep.subr.bf16.mxu0 0
        %2273 = vmatpush2.bf16.msra.mxu0 0
        %2274 = vmatprep.mubr.bf16.mxu0 0
        %2275 = vmatmul.mubr.bf16.gmra.mxu0 %v2237
        %v2276 = vpop.f32.mrf.mxu0
        %v2277 = vadd.f32 0.0, %v2276
        %v2278 = vpop.f32.mrf.mxu0
        %v2279 = vpop.f32.mrf.mxu0
        %v2280 = vpop.f32.mrf.mxu0
        %2281 = vdwg.mxu0
        %v2283 = vsel %vm918, %v2233, 0
        %v2286 = vsel %vm922, %v1730, 0
        %2288 = vmatprep.subr.bf16.mxu0 0
        %2289 = vmatpush1.bf16.msra.mxu0 0
        %2290 = vmatprep.subr.bf16.mxu0 0
        %2291 = vmatpush1.bf16.msra.mxu0 0
        %2292 = vmatprep.subr.bf16.mxu0 0
        %2293 = vmatpush1.bf16.msra.mxu0 0
        %2294 = vmatprep.subr.bf16.mxu0 0
        %2295 = vmatpush1.bf16.msra.mxu0 0
        %2296 = vmatprep.subr.bf16.mxu0 0
        %2297 = vmatpush1.bf16.msra.mxu0 0
        %2298 = vmatprep.subr.bf16.mxu0 0
        %2299 = vmatpush1.bf16.msra.mxu0 0
        %2300 = vmatprep.subr.bf16.mxu0 0
        %2301 = vmatpush1.bf16.msra.mxu0 0
        %2302 = vmatprep.subr.bf16.mxu0 0
        %2303 = vmatpush1.bf16.msra.mxu0 %v2286
        %2304 = vmatprep.subr.bf16.mxu0 0
        %2305 = vmatpush2.bf16.msra.mxu0 0
        %2306 = vmatprep.subr.bf16.mxu0 0
        %2307 = vmatpush2.bf16.msra.mxu0 0
        %2308 = vmatprep.subr.bf16.mxu0 0
        %2309 = vmatpush2.bf16.msra.mxu0 0
        %2310 = vmatprep.subr.bf16.mxu0 0
        %2311 = vmatpush2.bf16.msra.mxu0 0
        %2312 = vmatprep.subr.bf16.mxu0 0
        %2313 = vmatpush2.bf16.msra.mxu0 0
        %2314 = vmatprep.subr.bf16.mxu0 0
        %2315 = vmatpush2.bf16.msra.mxu0 0
        %2316 = vmatprep.subr.bf16.mxu0 0
        %2317 = vmatpush2.bf16.msra.mxu0 0
        %2318 = vmatprep.subr.bf16.mxu0 0
        %2319 = vmatpush2.bf16.msra.mxu0 0
        %2320 = vmatprep.mubr.bf16.mxu0 0
        %2321 = vmatmul.mubr.bf16.gmra.mxu0 %v2283
        %v2322 = vpop.f32.mrf.mxu0
        %v2323 = vadd.f32 0.0, %v2322
        %v2324 = vpop.f32.mrf.mxu0
        %v2325 = vpop.f32.mrf.mxu0
        %v2326 = vpop.f32.mrf.mxu0
        %2327 = vdwg.mxu0
        %v2329 = vsel %vm918, %v2234, 0
        %v2332 = vsel %vm922, %v1731, 0
        %2334 = vmatprep.subr.bf16.mxu0 0
        %2335 = vmatpush1.bf16.msra.mxu0 0
        %2336 = vmatprep.subr.bf16.mxu0 0
        %2337 = vmatpush1.bf16.msra.mxu0 0
        %2338 = vmatprep.subr.bf16.mxu0 0
        %2339 = vmatpush1.bf16.msra.mxu0 0
        %2340 = vmatprep.subr.bf16.mxu0 0
        %2341 = vmatpush1.bf16.msra.mxu0 0
        %2342 = vmatprep.subr.bf16.mxu0 0
        %2343 = vmatpush1.bf16.msra.mxu0 0
        %2344 = vmatprep.subr.bf16.mxu0 0
        %2345 = vmatpush1.bf16.msra.mxu0 0
        %2346 = vmatprep.subr.bf16.mxu0 0
        %2347 = vmatpush1.bf16.msra.mxu0 0
        %2348 = vmatprep.subr.bf16.mxu0 0
        %2349 = vmatpush1.bf16.msra.mxu0 %v2332
        %2350 = vmatprep.subr.bf16.mxu0 0
        %2351 = vmatpush2.bf16.msra.mxu0 0
        %2352 = vmatprep.subr.bf16.mxu0 0
        %2353 = vmatpush2.bf16.msra.mxu0 0
        %2354 = vmatprep.subr.bf16.mxu0 0
        %2355 = vmatpush2.bf16.msra.mxu0 0
        %2356 = vmatprep.subr.bf16.mxu0 0
        %2357 = vmatpush2.bf16.msra.mxu0 0
        %2358 = vmatprep.subr.bf16.mxu0 0
        %2359 = vmatpush2.bf16.msra.mxu0 0
        %2360 = vmatprep.subr.bf16.mxu0 0
        %2361 = vmatpush2.bf16.msra.mxu0 0
        %2362 = vmatprep.subr.bf16.mxu0 0
        %2363 = vmatpush2.bf16.msra.mxu0 0
        %2364 = vmatprep.subr.bf16.mxu0 0
        %2365 = vmatpush2.bf16.msra.mxu0 0
        %2366 = vmatprep.mubr.bf16.mxu0 0
        %2367 = vmatmul.mubr.bf16.gmra.mxu0 %v2329
        %v2368 = vpop.f32.mrf.mxu0
        %v2369 = vadd.f32 0.0, %v2368
        %v2370 = vpop.f32.mrf.mxu0
        %v2371 = vpop.f32.mrf.mxu0
        %v2372 = vpop.f32.mrf.mxu0
        %2373 = vdwg.mxu0
        %v2375 = vsel %vm918, %v2235, 0
        %v2378 = vsel %vm922, %v1732, 0
        %2380 = vmatprep.subr.bf16.mxu0 0
        %2381 = vmatpush1.bf16.msra.mxu0 0
        %2382 = vmatprep.subr.bf16.mxu0 0
        %2383 = vmatpush1.bf16.msra.mxu0 0
        %2384 = vmatprep.subr.bf16.mxu0 0
        %2385 = vmatpush1.bf16.msra.mxu0 0
        %2386 = vmatprep.subr.bf16.mxu0 0
        %2387 = vmatpush1.bf16.msra.mxu0 0
        %2388 = vmatprep.subr.bf16.mxu0 0
        %2389 = vmatpush1.bf16.msra.mxu0 0
        %2390 = vmatprep.subr.bf16.mxu0 0
        %2391 = vmatpush1.bf16.msra.mxu0 0
        %2392 = vmatprep.subr.bf16.mxu0 0
        %2393 = vmatpush1.bf16.msra.mxu0 0
        %2394 = vmatprep.subr.bf16.mxu0 0
        %2395 = vmatpush1.bf16.msra.mxu0 %v2378
        %2396 = vmatprep.subr.bf16.mxu0 0
        %2397 = vmatpush2.bf16.msra.mxu0 0
        %2398 = vmatprep.subr.bf16.mxu0 0
        %2399 = vmatpush2.bf16.msra.mxu0 0
        %2400 = vmatprep.subr.bf16.mxu0 0
        %2401 = vmatpush2.bf16.msra.mxu0 0
        %2402 = vmatprep.subr.bf16.mxu0 0
        %2403 = vmatpush2.bf16.msra.mxu0 0
        %2404 = vmatprep.subr.bf16.mxu0 0
        %2405 = vmatpush2.bf16.msra.mxu0 0
        %2406 = vmatprep.subr.bf16.mxu0 0
        %2407 = vmatpush2.bf16.msra.mxu0 0
        %2408 = vmatprep.subr.bf16.mxu0 0
        %2409 = vmatpush2.bf16.msra.mxu0 0
        %2410 = vmatprep.subr.bf16.mxu0 0
        %2411 = vmatpush2.bf16.msra.mxu0 0
        %2412 = vmatprep.mubr.bf16.mxu0 0
        %2413 = vmatmul.mubr.bf16.gmra.mxu0 %v2375
        %v2414 = vpop.f32.mrf.mxu0
        %v2415 = vadd.f32 0.0, %v2414
        %v2416 = vpop.f32.mrf.mxu0
        %v2417 = vpop.f32.mrf.mxu0
        %v2418 = vpop.f32.mrf.mxu0
        %2419 = vdwg.mxu0
        %v2420 = vsel %vm771, %v2277, 0.0
        %v2421 = vsel %vm771, %v2323, 0.0
        %v2422 = vadd.f32 %v2420, %v2421
        %v2423 = vsel %vm771, %v2369, 0.0
        %v2424 = vadd.f32 %v2422, %v2423
        %v2425 = vsel %vm771, %v2415, 0.0
        %v2426 = vadd.f32 %v2424, %v2425
        %v2428 = vlaneseq
        %v2429 = vshrl.u32 %v2428, 7
        %v2430 = vsub.s32 0, %v2429
        %v2431 = vrot.slane %v1733, %v2430
        %v2433 = vadd.f32 %v2426, %v2431
        %v2434 = vadd.f32 %v2433, %v1582
        %v2435 = vld [vmem:[%s15] sm:$0x1]
        %v2436 = vld [vmem:[%s16] sm:$0x1]
        %v2437 = vsel %vm771, %v2434, 0.0
        %2438 = vadd.xlane.f32.xlu0 %v2437
        %v2439 = vpop.xlane.xlu0 %2438
        %v2440 = vmul.f32 %v2439, %v1558
        %v2441 = vsub.f32 %v2434, %v2440
        %v2442 = vmul.f32 %v2441, %v2441
        %v2443 = vsel %vm771, %v2442, 0.0
        %2444 = vadd.xlane.f32.xlu0 %v2443
        %v2445 = vpop.xlane.xlu0 %2444
        %v2446 = vmul.f32 %v2445, %v1558
        %v2447 = vadd.f32 %v2446, 1e-05
        %v2448 = vrsqrt.pop %v2447
        %v2449 = vmul.f32 %v2441, %v2448
        %v2451 = vlaneseq
        %v2452 = vshrl.u32 %v2451, 7
        %v2453 = vsub.s32 0, %v2452
        %v2454 = vrot.slane %v2435, %v2453
        %v2456 = vmul.f32 %v2449, %v2454
        %v2458 = vlaneseq
        %v2459 = vshrl.u32 %v2458, 7
        %v2460 = vsub.s32 0, %v2459
        %v2461 = vrot.slane %v2436, %v2460
        %v2463 = vadd.f32 %v2456, %v2461
        %2464 = vst.msk [vmem:[%s742] sm:$0xff] %vm771, %v2463
        %s2465 = sand.u32 %s421, 1
        %s2466 = scalar_lea.sflag [#allocation4], %s2465
        %s2467 = sand.u32 %s421, 1
        %s2468 = smul.addr %s2467, 8
        %s2469 = scalar_lea.vmem [#allocation20], %s2468
        // Predicated region
        $region133: #{tpu_custom_call.1} parent=87 // pred_check
          %p2470 = pneg %p431
        $region134: #{tpu_custom_call.1} parent=87 // pred_check_branch
          %2472 = sbr.rel (%p2470) target = $region136
        $region135: #{tpu_custom_call.1} parent=87 // pred_region
          %s2474 = ssub.s32 128, 128
          %2475 = vsyncadd %s2466, %s2474
          %s2476 = smul.addr %s41, 128
          %s2477 = scalar_lea.hbm %s17, %s2476
          %s2479 = sshll.u32 %s2469, 4
          %s2480 = int_to_ptr.vmem [resolvable:$true] %s2479
          %2482 = dma.vmem_to_hbm [thread:$0]  %s2480, 128, %s2477, %s2466
        $region136: #{tpu_custom_call.1} parent=87 // pred_fallthru
          _
      $region88: #{tpu_custom_call.1} parent=5 // pred_fallthru
        _
      %p2483 = scmp.le.s32.totalorder 2, %s36
      // Predicated region
      $region137: #{tpu_custom_call.1} parent=5 // pred_check
        %p2484 = pneg %p2483
      $region138: #{tpu_custom_call.1} parent=5 // pred_check_branch
        %2486 = sbr.rel (%p2484) target = $region140
      $region139: #{tpu_custom_call.1} parent=5 // pred_region
        %s2487 = ssub.s32 %s36, 2
        // Predicated region
        $region141: #{tpu_custom_call.1} parent=139 // pred_check
          %p2488 = pneg %p437
        $region142: #{tpu_custom_call.1} parent=139 // pred_check_branch
          %2490 = sbr.rel (%p2488) target = $region144
        $region143: #{tpu_custom_call.1} parent=139 // pred_region
          %s2491 = sand.u32 %s422, 1
          %s2492 = scalar_lea.sflag [#allocation4], %s2491
          %s2493 = sand.u32 %s422, 1
          %s2494 = smul.addr %s2493, 8
          %s2495 = scalar_lea.vmem [#allocation20], %s2494
          %2496 = dma.done %s2492, 128
        $region144: #{tpu_custom_call.1} parent=139 // pred_fallthru
          _
      $region140: #{tpu_custom_call.1} parent=5 // pred_fallthru
        _
    $region6: #{tpu_custom_call.1} parent=1 // loop_footer
      %s40 = sadd.s32 1, %s36
    $region7: #{tpu_custom_call.1} parent=1 // loop_footer_branch
      %35 = sbr.rel target = $region3
    $region8: #{tpu_custom_call.1} parent=1 // loop_exit
      _
    %2497 = vsyncpa [#allocation3], 1
    %s2498 = scalar_lea.sflag [#allocation3], 1
    %2499 = vsyncpa %s2498, 1
    %2500 = vsyncpa [#allocation6], 1
    %s2501 = scalar_lea.sflag [#allocation6], 1
    %2502 = vsyncpa %s2501, 1
    %2503 = vsyncpa [#allocation9], 1
    %2504 = vsyncpa [#allocation12], 1
    %2505 = vsyncpa [#allocation15], 1
    %2506 = vsyncpa [#allocation18], 1
    %2507 = vsyncpa [#allocation4], 1
    %s2508 = scalar_lea.sflag [#allocation4], 1
    %2509 = vsyncpa %s2508, 1

</llo_original>
